<compile_context>
chip_gen: v7x
topology: tpu7x:2x2x1
jax: 0.10.0
libtpu: 0.0.40
codegen_flags: <defaults>
</compile_context>

<pallas_src>
import functools

import jax
import jax.numpy as jnp
from jax.experimental import pallas as pl
from jax.experimental.pallas import tpu as pltpu

LANE = 128


def _round_up(v, m):
    return (v + m - 1) // m * m


def _pad_to(x, shape):
    widths = [(0, t - s) for s, t in zip(x.shape, shape)]
    return jnp.pad(x, widths)


# ----------------------------------------------------------------------------
# Fused kernel: grid = (num_layers, K-tiles); h resident in bf16 VMEM scratch.
# ----------------------------------------------------------------------------
def _fused_gcnii_kernel(beta_ref,                       # [L] f32 scalar prefetch (SMEM)
                        h0_ref,                         # [Np, Dp] bf16, constant index
                        a_ref,                          # [1, Np, tk] bf16, (l, k) tile
                        w_ref, g_ref, bb_ref,           # per-layer W_l / BN params
                        w_out_ref, b_out_ref,           # output projection
                        out_ref,                        # [Np, Cp] f32
                        h_scr, acc_scr,                 # resident h (bf16), A@h acc (f32)
                        *, alpha, eps, inv_n, tk):
    l = pl.program_id(0)
    k = pl.program_id(1)
    last_l = pl.num_programs(0) - 1
    last_k = pl.num_programs(1) - 1

    # Very first grid step: establish resident h (= h0) in VMEM scratch.
    @pl.when(jnp.logical_and(l == 0, k == 0))
    def _():
        h_scr[...] = h0_ref[...]

    @pl.when(k == 0)
    def _():
        acc_scr[...] = jnp.zeros_like(acc_scr)

    # Streamed propagate: accumulate A_l[:, k-tile] @ h[k-tile] (bf16 -> f32).
    row0 = pl.multiple_of(k * tk, tk)
    acc_scr[...] += jnp.dot(a_ref[0], h_scr[pl.ds(row0, tk), :],
                            preferred_element_type=jnp.float32)

    # Layer tail once the contraction over nodes is complete.
    @pl.when(k == last_k)
    def _():
        beta = beta_ref[l]
        agg = acc_scr[...]
        support = (1.0 - alpha) * agg + alpha * h0_ref[...].astype(jnp.float32)
        z = (1.0 - beta) * support + beta * jnp.dot(
            support.astype(jnp.bfloat16), w_ref[0],
            preferred_element_type=jnp.float32)

        # One-pass BatchNorm1d (training-mode stats, biased variance).
        # Padded rows of z are exactly zero, so sums over the padded node axis
        # equal sums over the true nodes; divide by the TRUE node count.
        mean = jnp.sum(z, axis=0, keepdims=True) * inv_n
        ex2 = jnp.sum(z * z, axis=0, keepdims=True) * inv_n
        var = ex2 - mean * mean
        y = (z - mean) * jax.lax.rsqrt(var + eps) * g_ref[0] + bb_ref[0]

        # ReLU; dropout p = 0 -> identity.  Resident h stored as bf16.
        h_scr[...] = jnp.maximum(y, 0.0).astype(jnp.bfloat16)

    # Last layer, last K step: output projection, lane-dense slab write.
    @pl.when(jnp.logical_and(l == last_l, k == last_k))
    def _():
        out = jnp.dot(h_scr[...], w_out_ref[...],
                      preferred_element_type=jnp.float32)
        out_ref[...] = (out + b_out_ref[...]).astype(out_ref.dtype)


# ----------------------------------------------------------------------------
# Wrapper: pad to lane width, stack per-layer params, single pallas_call.
# ----------------------------------------------------------------------------
def gcnii_ogb_forward(params, adjs, x, *, alpha, lam, eps=1e-5, max_tk=512):
    n, _ = x.shape
    hidden = params["w_in"].shape[1]
    classes = params["w_out"].shape[1]
    num_layers = len(params["layer_w"])
    assert num_layers >= 1

    n_pad = _round_up(n, LANE)
    d_pad = _round_up(hidden, LANE)
    c_pad = _round_up(classes, LANE)

    # Contraction (node) tile of the adjacency matmul.
    tk = LANE
    for cand in (max_tk, 256, LANE):
        if cand <= n_pad and n_pad % cand == 0:
            tk = cand
            break

    # Input projection evicted from the fused kernel (plain XLA).  Padded rows
    # of h0 are zero, which keeps padded rows of z exactly zero in every layer.
    hp = jax.lax.Precision.HIGHEST
    h0 = jnp.maximum(
        jnp.dot(x, params["w_in"], precision=hp) + params["b_in"], 0.0)
    h0_p = _pad_to(h0, (n_pad, d_pad)).astype(jnp.bfloat16)

    w_out = _pad_to(params["w_out"], (d_pad, c_pad)).astype(jnp.bfloat16)
    b_out = _pad_to(params["b_out"], (1, c_pad)).astype(jnp.float32)

    layer_w = _pad_to(jnp.stack(params["layer_w"]),
                      (num_layers, d_pad, d_pad)).astype(jnp.bfloat16)
    gamma = _pad_to(jnp.stack(params["bn_gamma"]),
                    (num_layers, 1, d_pad)).astype(jnp.float32)
    bbeta = _pad_to(jnp.stack(params["bn_beta"]),
                    (num_layers, 1, d_pad)).astype(jnp.float32)

    # Dominant HBM traffic -> bf16; accumulation stays f32 in the kernel.
    a = _pad_to(jnp.stack(adjs),
                (num_layers, n_pad, n_pad)).astype(jnp.bfloat16)

    # beta_l = log(lambda / l + 1), precomputed, read from SMEM.
    betas = jnp.log(lam / jnp.arange(1, num_layers + 1, dtype=jnp.float32)
                    + 1.0).astype(jnp.float32)

    # Explicit VMEM budget: double-buffered blocks + resident scratch + slack.
    vmem_bytes = (
        2 * n_pad * tk * 2            # A_l K-tile (bf16), double buffered
        + 2 * n_pad * d_pad * 2       # h0 input block (bf16)
        + 2 * d_pad * d_pad * 2       # W_l block (bf16)
        + 4 * d_pad * 4               # gamma + bn beta blocks
        + 2 * d_pad * c_pad * 2       # W_out (bf16)
        + 2 * c_pad * 4               # b_out
        + 2 * n_pad * c_pad * 4       # output block (f32)
        + n_pad * d_pad * 2           # resident h scratch (bf16)
        + n_pad * d_pad * 4           # A@h accumulator (f32)
    )
    vmem_limit = min(int(vmem_bytes * 1.5) + (2 << 20), 60 << 20)

    grid_spec = pltpu.PrefetchScalarGridSpec(
        num_scalar_prefetch=1,
        grid=(num_layers, n_pad // tk),
        in_specs=[
            pl.BlockSpec((n_pad, d_pad), lambda l, k, b: (0, 0)),        # h0
            pl.BlockSpec((1, n_pad, tk), lambda l, k, b: (l, 0, k)),     # A_l tile
            pl.BlockSpec((1, d_pad, d_pad), lambda l, k, b: (l, 0, 0)),  # W_l
            pl.BlockSpec((1, 1, d_pad), lambda l, k, b: (l, 0, 0)),      # gamma_l
            pl.BlockSpec((1, 1, d_pad), lambda l, k, b: (l, 0, 0)),      # bn beta_l
            pl.BlockSpec((d_pad, c_pad), lambda l, k, b: (0, 0)),        # W_out
            pl.BlockSpec((1, c_pad), lambda l, k, b: (0, 0)),            # b_out
        ],
        out_specs=pl.BlockSpec((n_pad, c_pad), lambda l, k, b: (0, 0)),
        scratch_shapes=[pltpu.VMEM((n_pad, d_pad), jnp.bfloat16),   # resident h
                        pltpu.VMEM((n_pad, d_pad), jnp.float32)],   # agg acc
    )

    out = pl.pallas_call(
        functools.partial(_fused_gcnii_kernel, alpha=float(alpha),
                          eps=float(eps), inv_n=1.0 / float(n), tk=tk),
        out_shape=jax.ShapeDtypeStruct((n_pad, c_pad), jnp.float32),
        grid_spec=grid_spec,
        compiler_params=pltpu.CompilerParams(
            dimension_semantics=("arbitrary", "arbitrary"),
            vmem_limit_bytes=vmem_limit),
    )(betas, h0_p, a, layer_w, gamma, bbeta, w_out, b_out)

    return out[:n, :classes]


# ----------------------------------------------------------------------------
# Pure-JAX reference (mirrors the kernel's bf16 operand / f32 accumulation).
# ----------------------------------------------------------------------------
def gcnii_reference(params, adjs, x, *, alpha, lam, eps=1e-5):
    hp = jax.lax.Precision.HIGHEST
    h0_f = jnp.maximum(
        jnp.dot(x, params["w_in"], precision=hp) + params["b_in"], 0.0)
    h0 = h0_f.astype(jnp.bfloat16)     # kernel stores h0 / h in bf16
    h = h0
    for i in range(len(params["layer_w"])):
        beta = jnp.log(lam / (i + 1) + 1.0).astype(jnp.float32)
        a = adjs[i].astype(jnp.bfloat16)
        agg = jnp.dot(a, h, preferred_element_type=jnp.float32)
        support = (1.0 - alpha) * agg + alpha * h0.astype(jnp.float32)
        w = params["layer_w"][i].astype(jnp.bfloat16)
        z = (1.0 - beta) * support + beta * jnp.dot(
            support.astype(jnp.bfloat16), w,
            preferred_element_type=jnp.float32)
        mean = jnp.mean(z, axis=0, keepdims=True)
        c = z - mean
        var = jnp.mean(c * c, axis=0, keepdims=True)
        y = c * jax.lax.rsqrt(var + eps) * params["bn_gamma"][i] \
            + params["bn_beta"][i]
        h = jnp.maximum(y, 0.0).astype(jnp.bfloat16)
    w_out = params["w_out"].astype(jnp.bfloat16)
    return jnp.dot(h, w_out, preferred_element_type=jnp.float32) \
        + params["b_out"]


# ----------------------------------------------------------------------------
# Deterministic parameter / input construction and smoke test
# ----------------------------------------------------------------------------
def make_params(key, features_dim, hidden_dim, num_classes, num_layers):
    keys = jax.random.split(key, 2 + num_layers)
    scale_in = 1.0 / jnp.sqrt(features_dim)
    scale_h = 1.0 / jnp.sqrt(hidden_dim)
    params = {
        "w_in": scale_in * jax.random.normal(
            keys[0], (features_dim, hidden_dim), jnp.float32),
        "b_in": jnp.zeros((1, hidden_dim), jnp.float32),
        "w_out": scale_h * jax.random.normal(
            keys[1], (hidden_dim, num_classes), jnp.float32),
        "b_out": jnp.zeros((1, num_classes), jnp.float32),
        "layer_w": [],
        "bn_gamma": [],
        "bn_beta": [],
    }
    for i in range(num_layers):
        params["layer_w"].append(
            scale_h * jax.random.normal(keys[2 + i], (hidden_dim, hidden_dim),
                                        jnp.float32))
        params["bn_gamma"].append(jnp.ones((1, hidden_dim), jnp.float32))
        params["bn_beta"].append(jnp.zeros((1, hidden_dim), jnp.float32))
    return params


def make_adjs(key, num_layers, n):
    """Row-normalized dense adjacency (with self-loops) per layer."""
    adjs = []
    keys = jax.random.split(key, num_layers)
    for i in range(num_layers):
        a = (jax.random.uniform(keys[i], (n, n)) < 0.15).astype(jnp.float32)
        a = a + jnp.eye(n, dtype=jnp.float32)
        a = a / jnp.sum(a, axis=1, keepdims=True)
        adjs.append(a)
    return adjs


if __name__ == "__main__":
    N = 64            # nodes
    FEATURES = 16     # input feature dim
    HIDDEN = 32       # hidden dim
    CLASSES = 8       # num classes
    NUM_LAYERS = 3
    ALPHA = 0.1
    LAMBDA = 0.5

    root = jax.random.PRNGKey(0)
    k_x, k_p, k_a = jax.random.split(root, 3)

    x = jax.random.normal(k_x, (N, FEATURES), jnp.float32)
    params = make_params(k_p, FEATURES, HIDDEN, CLASSES, NUM_LAYERS)
    adjs = make_adjs(k_a, NUM_LAYERS, N)

    out = gcnii_ogb_forward(params, adjs, x, alpha=ALPHA, lam=LAMBDA)
    out = jax.block_until_ready(out)

    ref = gcnii_reference(params, adjs, x, alpha=ALPHA, lam=LAMBDA)

    assert out.shape == (N, CLASSES), out.shape
    assert jnp.all(jnp.isfinite(out))
    max_err = float(jnp.max(jnp.abs(out - ref)))
    assert jnp.allclose(out, ref, rtol=2e-2, atol=2e-2), max_err
    print("KERNEL_OK")
</pallas_src>

<mosaic_0001>
module attributes {stable_mosaic.version = 11 : i64} {
  func.func @_fused_gcnii_kernel(%arg0: i32, %arg1: i32, %arg2: memref<3xf32, #tpu.memory_space<smem>>, %arg3: memref<128x128xbf16, #tpu.memory_space<vmem>>, %arg4: memref<1x128x128xbf16, #tpu.memory_space<vmem>>, %arg5: memref<1x128x128xbf16, #tpu.memory_space<vmem>>, %arg6: memref<1x1x128xf32, #tpu.memory_space<vmem>>, %arg7: memref<1x1x128xf32, #tpu.memory_space<vmem>>, %arg8: memref<128x128xbf16, #tpu.memory_space<vmem>>, %arg9: memref<1x128xf32, #tpu.memory_space<vmem>>, %arg10: memref<128x128xf32, #tpu.memory_space<vmem>>, %arg11: memref<128x128xbf16, #tpu.memory_space<vmem>>, %arg12: memref<128x128xf32, #tpu.memory_space<vmem>>) attributes {dimension_semantics = [#tpu.dimension_semantics<arbitrary>, #tpu.dimension_semantics<arbitrary>], iteration_bounds = array<i64: 3, 1>, scalar_prefetch = 1 : i64, scratch_operands = 2 : i64, tpu.core_type = #tpu.core_type<tc>, window_params = [{pipeline_mode = #tpu.pipeline_mode<synchronous>, transform_indices = @transform_0, window_bounds = array<i64: 128, 128>}, {transform_indices = @transform_1, window_bounds = array<i64: 1, 128, 128>}, {transform_indices = @transform_2, window_bounds = array<i64: 1, 128, 128>}, {transform_indices = @transform_3, window_bounds = array<i64: 1, 1, 128>}, {transform_indices = @transform_4, window_bounds = array<i64: 1, 1, 128>}, {pipeline_mode = #tpu.pipeline_mode<synchronous>, transform_indices = @transform_5, window_bounds = array<i64: 128, 128>}, {pipeline_mode = #tpu.pipeline_mode<synchronous>, transform_indices = @transform_6, window_bounds = array<i64: 1, 128>}, {pipeline_mode = #tpu.pipeline_mode<synchronous>, transform_indices = @transform_7, window_bounds = array<i64: 128, 128>}]} {
    %c0_i32 = arith.constant 0 : i32
    %0 = arith.cmpi eq, %arg0, %c0_i32 : i32
    %c0_i32_0 = arith.constant 0 : i32
    %1 = arith.cmpi eq, %arg1, %c0_i32_0 : i32
    %2 = arith.andi %0, %1 : i1
    %3 = arith.extui %2 : i1 to i32
    %c0_i32_1 = arith.constant 0 : i32
    %4 = arith.cmpi ne, %3, %c0_i32_1 : i32
    scf.if %4 {
      %c0_15 = arith.constant 0 : index
      %c0_16 = arith.constant 0 : index
      %26 = vector.load %arg3[%c0_15, %c0_16] : memref<128x128xbf16, #tpu.memory_space<vmem>>, vector<128x128xbf16>
      %c0_17 = arith.constant 0 : index
      %c0_18 = arith.constant 0 : index
      %27 = vector.load %arg11[%c0_17, %c0_18] : memref<128x128xbf16, #tpu.memory_space<vmem>>, vector<128x128xbf16>
      tpu.vector_store %arg11[%c0_17, %c0_18], %26 {strides = array<i32>} : memref<128x128xbf16, #tpu.memory_space<vmem>>, vector<128x128xbf16>,
    } else {
    }
    %c0_i32_2 = arith.constant 0 : i32
    %5 = arith.cmpi eq, %arg1, %c0_i32_2 : i32
    %6 = arith.extui %5 : i1 to i32
    %c0_i32_3 = arith.constant 0 : i32
    %7 = arith.cmpi ne, %6, %c0_i32_3 : i32
    scf.if %7 {
      %cst_15 = arith.constant 0.000000e+00 : f32
      %26 = vector.broadcast %cst_15 : f32 to vector<128x128xf32>
      %c0_16 = arith.constant 0 : index
      %c0_17 = arith.constant 0 : index
      %27 = vector.load %arg12[%c0_16, %c0_17] : memref<128x128xf32, #tpu.memory_space<vmem>>, vector<128x128xf32>
      tpu.vector_store %arg12[%c0_16, %c0_17], %26 {strides = array<i32>} : memref<128x128xf32, #tpu.memory_space<vmem>>, vector<128x128xf32>,
    } else {
    }
    %c128_i32 = arith.constant 128 : i32
    %8 = arith.muli %arg1, %c128_i32 : i32
    %9 = tpu.assume_multiple %8, 128 : i32
    %c0 = arith.constant 0 : index
    %c0_4 = arith.constant 0 : index
    %10 = vector.load %arg12[%c0, %c0_4] : memref<128x128xf32, #tpu.memory_space<vmem>>, vector<128x128xf32>
    %c0_5 = arith.constant 0 : index
    %c0_6 = arith.constant 0 : index
    %c0_7 = arith.constant 0 : index
    %11 = vector.load %arg4[%c0_5, %c0_6, %c0_7] : memref<1x128x128xbf16, #tpu.memory_space<vmem>>, vector<1x128x128xbf16>
    %12 = vector.shape_cast %11 : vector<1x128x128xbf16> to vector<128x128xbf16>
    %13 = arith.index_cast %9 : i32 to index
    %c0_8 = arith.constant 0 : index
    %14 = vector.load %arg11[%13, %c0_8] : memref<128x128xbf16, #tpu.memory_space<vmem>>, vector<128x128xbf16>
    %cst = arith.constant dense<0.000000e+00> : vector<128x128xf32>
    %15 = tpu.matmul %12, %14, %cst {dimension_numbers = #tpu.dot_dimension_numbers<[1], [0], [0], [1], [0, 0, 1, 1], [], []>} : vector<128x128xbf16>, vector<128x128xbf16>, vector<128x128xf32> -> vector<128x128xf32>
    %16 = arith.addf %10, %15 : vector<128x128xf32>
    %c0_9 = arith.constant 0 : index
    %c0_10 = arith.constant 0 : index
    %17 = vector.load %arg12[%c0_9, %c0_10] : memref<128x128xf32, #tpu.memory_space<vmem>>, vector<128x128xf32>
    tpu.vector_store %arg12[%c0_9, %c0_10], %16 {strides = array<i32>} : memref<128x128xf32, #tpu.memory_space<vmem>>, vector<128x128xf32>,
    %c0_i32_11 = arith.constant 0 : i32
    %18 = arith.cmpi eq, %arg1, %c0_i32_11 : i32
    %19 = arith.extui %18 : i1 to i32
    %c0_i32_12 = arith.constant 0 : i32
    %20 = arith.cmpi ne, %19, %c0_i32_12 : i32
    scf.if %20 {
      %26 = arith.index_cast %arg0 : i32 to index
      %27 = memref.load %arg2[%26] : memref<3xf32, #tpu.memory_space<smem>>
      %c0_15 = arith.constant 0 : index
      %c0_16 = arith.constant 0 : index
      %28 = vector.load %arg12[%c0_15, %c0_16] : memref<128x128xf32, #tpu.memory_space<vmem>>, vector<128x128xf32>
      %cst_17 = arith.constant 0.899999976 : f32
      %29 = vector.broadcast %cst_17 : f32 to vector<128x128xf32>
      %30 = arith.mulf %29, %28 : vector<128x128xf32>
      %c0_18 = arith.constant 0 : index
      %c0_19 = arith.constant 0 : index
      %31 = vector.load %arg3[%c0_18, %c0_19] : memref<128x128xbf16, #tpu.memory_space<vmem>>, vector<128x128xbf16>
      %32 = arith.extf %31 : vector<128x128xbf16> to vector<128x128xf32>
      %cst_20 = arith.constant 1.000000e-01 : f32
      %33 = vector.broadcast %cst_20 : f32 to vector<128x128xf32>
      %34 = arith.mulf %33, %32 : vector<128x128xf32>
      %35 = arith.addf %30, %34 : vector<128x128xf32>
      %cst_21 = arith.constant 1.000000e+00 : f32
      %36 = arith.subf %cst_21, %27 : f32
      %37 = vector.broadcast %36 : f32 to vector<128x128xf32>
      %38 = arith.mulf %37, %35 : vector<128x128xf32>
      %39 = arith.truncf %35 : vector<128x128xf32> to vector<128x128xbf16>
      %c0_22 = arith.constant 0 : index
      %c0_23 = arith.constant 0 : index
      %c0_24 = arith.constant 0 : index
      %40 = vector.load %arg5[%c0_22, %c0_23, %c0_24] : memref<1x128x128xbf16, #tpu.memory_space<vmem>>, vector<1x128x128xbf16>
      %41 = vector.shape_cast %40 : vector<1x128x128xbf16> to vector<128x128xbf16>
      %cst_25 = arith.constant dense<0.000000e+00> : vector<128x128xf32>
      %42 = tpu.matmul %39, %41, %cst_25 {dimension_numbers = #tpu.dot_dimension_numbers<[1], [0], [0], [1], [0, 0, 1, 1], [], []>} : vector<128x128xbf16>, vector<128x128xbf16>, vector<128x128xf32> -> vector<128x128xf32>
      %43 = vector.broadcast %27 : f32 to vector<128x128xf32>
      %44 = arith.mulf %43, %42 : vector<128x128xf32>
      %45 = arith.addf %38, %44 : vector<128x128xf32>
      %cst_26 = arith.constant dense<0.000000e+00> : vector<128xf32>
      %46 = vector.multi_reduction <add>, %45, %cst_26 [0] : vector<128x128xf32> to vector<128xf32>
      %47 = vector.shape_cast %46 : vector<128xf32> to vector<1x128xf32>
      %cst_27 = arith.constant 1.562500e-02 : f32
      %48 = vector.broadcast %cst_27 : f32 to vector<1x128xf32>
      %49 = arith.mulf %47, %48 : vector<1x128xf32>
      %50 = arith.mulf %45, %45 : vector<128x128xf32>
      %cst_28 = arith.constant dense<0.000000e+00> : vector<128xf32>
      %51 = vector.multi_reduction <add>, %50, %cst_28 [0] : vector<128x128xf32> to vector<128xf32>
      %52 = vector.shape_cast %51 : vector<128xf32> to vector<1x128xf32>
      %cst_29 = arith.constant 1.562500e-02 : f32
      %53 = vector.broadcast %cst_29 : f32 to vector<1x128xf32>
      %54 = arith.mulf %52, %53 : vector<1x128xf32>
      %55 = arith.mulf %49, %49 : vector<1x128xf32>
      %56 = arith.subf %54, %55 : vector<1x128xf32>
      %57 = vector.broadcast %49 : vector<1x128xf32> to vector<128x128xf32>
      %58 = arith.subf %45, %57 : vector<128x128xf32>
      %cst_30 = arith.constant 9.99999974E-6 : f32
      %59 = vector.broadcast %cst_30 : f32 to vector<1x128xf32>
      %60 = arith.addf %56, %59 : vector<1x128xf32>
      %61 = math.rsqrt %60 : vector<1x128xf32>
      %62 = vector.broadcast %61 : vector<1x128xf32> to vector<128x128xf32>
      %63 = arith.mulf %58, %62 : vector<128x128xf32>
      %c0_31 = arith.constant 0 : index
      %c0_32 = arith.constant 0 : index
      %c0_33 = arith.constant 0 : index
      %64 = vector.load %arg6[%c0_31, %c0_32, %c0_33] : memref<1x1x128xf32, #tpu.memory_space<vmem>>, vector<1x1x128xf32>
      %65 = vector.shape_cast %64 : vector<1x1x128xf32> to vector<1x128xf32>
      %66 = vector.broadcast %65 : vector<1x128xf32> to vector<128x128xf32>
      %67 = arith.mulf %63, %66 : vector<128x128xf32>
      %c0_34 = arith.constant 0 : index
      %c0_35 = arith.constant 0 : index
      %c0_36 = arith.constant 0 : index
      %68 = vector.load %arg7[%c0_34, %c0_35, %c0_36] : memref<1x1x128xf32, #tpu.memory_space<vmem>>, vector<1x1x128xf32>
      %69 = vector.shape_cast %68 : vector<1x1x128xf32> to vector<1x128xf32>
      %70 = vector.broadcast %69 : vector<1x128xf32> to vector<128x128xf32>
      %71 = arith.addf %67, %70 : vector<128x128xf32>
      %cst_37 = arith.constant 0.000000e+00 : f32
      %72 = vector.broadcast %cst_37 : f32 to vector<128x128xf32>
      %73 = arith.maximumf %71, %72 : vector<128x128xf32>
      %74 = arith.truncf %73 : vector<128x128xf32> to vector<128x128xbf16>
      %c0_38 = arith.constant 0 : index
      %c0_39 = arith.constant 0 : index
      %75 = vector.load %arg11[%c0_38, %c0_39] : memref<128x128xbf16, #tpu.memory_space<vmem>>, vector<128x128xbf16>
      tpu.vector_store %arg11[%c0_38, %c0_39], %74 {strides = array<i32>} : memref<128x128xbf16, #tpu.memory_space<vmem>>, vector<128x128xbf16>,
    } else {
    }
    %c2_i32 = arith.constant 2 : i32
    %21 = arith.cmpi eq, %arg0, %c2_i32 : i32
    %c0_i32_13 = arith.constant 0 : i32
    %22 = arith.cmpi eq, %arg1, %c0_i32_13 : i32
    %23 = arith.andi %21, %22 : i1
    %24 = arith.extui %23 : i1 to i32
    %c0_i32_14 = arith.constant 0 : i32
    %25 = arith.cmpi ne, %24, %c0_i32_14 : i32
    scf.if %25 {
      %c0_15 = arith.constant 0 : index
      %c0_16 = arith.constant 0 : index
      %26 = vector.load %arg11[%c0_15, %c0_16] : memref<128x128xbf16, #tpu.memory_space<vmem>>, vector<128x128xbf16>
      %c0_17 = arith.constant 0 : index
      %c0_18 = arith.constant 0 : index
      %27 = vector.load %arg8[%c0_17, %c0_18] : memref<128x128xbf16, #tpu.memory_space<vmem>>, vector<128x128xbf16>
      %cst_19 = arith.constant dense<0.000000e+00> : vector<128x128xf32>
      %28 = tpu.matmul %26, %27, %cst_19 {dimension_numbers = #tpu.dot_dimension_numbers<[1], [0], [0], [1], [0, 0, 1, 1], [], []>} : vector<128x128xbf16>, vector<128x128xbf16>, vector<128x128xf32> -> vector<128x128xf32>
      %c0_20 = arith.constant 0 : index
      %c0_21 = arith.constant 0 : index
      %29 = vector.load %arg9[%c0_20, %c0_21] : memref<1x128xf32, #tpu.memory_space<vmem>>, vector<1x128xf32>
      %30 = vector.broadcast %29 : vector<1x128xf32> to vector<128x128xf32>
      %31 = arith.addf %28, %30 : vector<128x128xf32>
      %c0_22 = arith.constant 0 : index
      %c0_23 = arith.constant 0 : index
      %32 = vector.load %arg10[%c0_22, %c0_23] : memref<128x128xf32, #tpu.memory_space<vmem>>, vector<128x128xf32>
      tpu.vector_store %arg10[%c0_22, %c0_23], %31 {strides = array<i32>} : memref<128x128xf32, #tpu.memory_space<vmem>>, vector<128x128xf32>,
    } else {
    }
    return
  }
  func.func @transform_0(%arg0: i32, %arg1: i32, %arg2: memref<3xf32, #tpu.memory_space<smem>>) -> (i32, i32) {
    %c0_i32 = arith.constant 0 : i32
    %c0_i32_0 = arith.constant 0 : i32
    %c0_i32_1 = arith.constant 0 : i32
    return %c0_i32, %c0_i32_0 : i32, i32
  }
  func.func @transform_1(%arg0: i32, %arg1: i32, %arg2: memref<3xf32, #tpu.memory_space<smem>>) -> (i32, i32, i32) {
    %c0_i32 = arith.constant 0 : i32
    %c0_i32_0 = arith.constant 0 : i32
    return %arg0, %c0_i32, %arg1 : i32, i32, i32
  }
  func.func @transform_2(%arg0: i32, %arg1: i32, %arg2: memref<3xf32, #tpu.memory_space<smem>>) -> (i32, i32, i32) {
    %c0_i32 = arith.constant 0 : i32
    %c0_i32_0 = arith.constant 0 : i32
    %c0_i32_1 = arith.constant 0 : i32
    return %arg0, %c0_i32, %c0_i32_0 : i32, i32, i32
  }
  func.func @transform_3(%arg0: i32, %arg1: i32, %arg2: memref<3xf32, #tpu.memory_space<smem>>) -> (i32, i32, i32) {
    %c0_i32 = arith.constant 0 : i32
    %c0_i32_0 = arith.constant 0 : i32
    %c0_i32_1 = arith.constant 0 : i32
    return %arg0, %c0_i32, %c0_i32_0 : i32, i32, i32
  }
  func.func @transform_4(%arg0: i32, %arg1: i32, %arg2: memref<3xf32, #tpu.memory_space<smem>>) -> (i32, i32, i32) {
    %c0_i32 = arith.constant 0 : i32
    %c0_i32_0 = arith.constant 0 : i32
    %c0_i32_1 = arith.constant 0 : i32
    return %arg0, %c0_i32, %c0_i32_0 : i32, i32, i32
  }
  func.func @transform_5(%arg0: i32, %arg1: i32, %arg2: memref<3xf32, #tpu.memory_space<smem>>) -> (i32, i32) {
    %c0_i32 = arith.constant 0 : i32
    %c0_i32_0 = arith.constant 0 : i32
    %c0_i32_1 = arith.constant 0 : i32
    return %c0_i32, %c0_i32_0 : i32, i32
  }
  func.func @transform_6(%arg0: i32, %arg1: i32, %arg2: memref<3xf32, #tpu.memory_space<smem>>) -> (i32, i32) {
    %c0_i32 = arith.constant 0 : i32
    %c0_i32_0 = arith.constant 0 : i32
    %c0_i32_1 = arith.constant 0 : i32
    return %c0_i32, %c0_i32_0 : i32, i32
  }
  func.func @transform_7(%arg0: i32, %arg1: i32, %arg2: memref<3xf32, #tpu.memory_space<smem>>) -> (i32, i32) {
    %c0_i32 = arith.constant 0 : i32
    %c0_i32_0 = arith.constant 0 : i32
    %c0_i32_1 = arith.constant 0 : i32
    return %c0_i32, %c0_i32_0 : i32, i32
  }
}

</mosaic_0001>

<llo_original>
// kernel: tpu_custom_call.1
$region0: #{tpu_custom_call.1}
  #allocation0 [shape = 'u32[]', space=smem, size = 0x4, offset = 0x4, fixed_abs, tag = 'smem constant byte address 0x4 - core index']
  #allocation1 [shape = 'u32[144,128]{1,0:T(1,128)}', space=vmem, size = 0x12000, scoped, tag = 'internal scratch']
  #allocation2 [shape = 'bf16[128,128]{1,0:T(16,128)(2,1)}', space=vmem, size = 0x8000, scoped, tag = 'scratch operand']
  #allocation3 [shape = 'f32[128,128]{1,0:T(8,128)}', space=vmem, size = 0x10000, scoped, tag = 'scratch operand']
  #allocation4 [shape = 's32[1]{0}', space=sflag, size = 0x4, scoped, tag = 'scoped memory for tpu_custom_call.1']
  #allocation5 [shape = 'u8[512]{0}', space=smem, size = 0x200, scoped, tag = 'prefetched SMEM operand 0']
  %s0 = inlined_call_operand.hbm [shape: f32[3], index: 0, kind: input, shape index: {}]
  %s1 = inlined_call_operand.hbm [shape: bf16[128,128], index: 1, kind: input, shape index: {}]
  %s2 = inlined_call_operand.hbm [shape: bf16[3,128,128], index: 2, kind: input, shape index: {}]
  %s3 = inlined_call_operand.hbm [shape: bf16[3,128,128], index: 3, kind: input, shape index: {}]
  %s4 = inlined_call_operand.vmem [shape: f32[3,1,128], index: 4, kind: input, shape index: {}]
  %s5 = inlined_call_operand.vmem [shape: f32[3,1,128], index: 5, kind: input, shape index: {}]
  %s6 = inlined_call_operand.hbm [shape: bf16[128,128], index: 6, kind: input, shape index: {}]
  %s7 = inlined_call_operand.vmem [shape: f32[1,128], index: 7, kind: input, shape index: {}]
  %s8 = inlined_call_operand.hbm [shape: f32[128,128], index: 8, kind: output, shape index: {}]
  %s9 = sld [smem:[#allocation0]]
  $region93: #{tpu_custom_call.1} parent=0
    _
  %s11 = ssub.s32 1, %s9
  %s12 = scalar_select 0, %s11, %s9
  %14 = dma.hbm_to_smem %s0, 16, [#allocation5], [#allocation4]
  %15 = dma.done [#allocation4], 16
  %16 = sfence
  $region1: #{tpu_custom_call.1} parent=0
    #allocation6 [shape = 'u8[32768]{0}', space=vmem, size = 0x8000, scoped, tag = 'input window, operand 1, single buffered']
    #allocation7 [shape = 's32[2]{0}', space=sflag, size = 0x8, scoped, tag = 'scoped memory for tpu_custom_call.1']
    #allocation8 [shape = 's32[2]{0}', space=sflag, size = 0x8, scoped, tag = 'scoped memory for tpu_custom_call.1']
    #allocation9 [shape = 'u8[65536]{0}', space=vmem, size = 0x10000, scoped, tag = 'input window, operand 2']
    #allocation10 [shape = 's32[2]{0}', space=sflag, size = 0x8, scoped, tag = 'scoped memory for tpu_custom_call.1']
    #allocation11 [shape = 'u8[65536]{0}', space=vmem, size = 0x10000, scoped, tag = 'input window, operand 3']
    #allocation12 [shape = 'u8[32768]{0}', space=vmem, size = 0x8000, scoped, tag = 'input window, operand 6, single buffered']
    #allocation13 [shape = 's32[1]{0}', space=sflag, size = 0x4, scoped, tag = 'scoped memory for tpu_custom_call.1']
    #allocation14 [shape = 'u8[65536]{0}', space=vmem, size = 0x10000, scoped, tag = 'output window, operand 0, single buffered']
    %17 = vsyncpa [#allocation7], 0
    %18 = vsyncpa [#allocation10], 0
    %s19 = scalar_lea.sflag [#allocation10], 1
    %20 = vsyncpa %s19, 0
    %21 = vsyncpa [#allocation13], 0
    %22 = vsyncpa [#allocation8], 0
    loop: start=0, step=1, limit=5
    $region2: #{tpu_custom_call.1} parent=1 // loop_pre_header
      _
    $region3: #{tpu_custom_call.1} parent=1 // loop_header
      %s24 = sphi 0, %s28
      %p25 = scmp.ge.s32.totalorder %s24, 5
      %s31 = sphi 0, %s43
      %s32 = sphi 0, %s39
      %s33 = sphi 0, %s31
      %s34 = sphi 0, %s32
      %s35 = sphi 0, %s33
      %s36 = sphi 0, %s34
      %s44 = sphi 0, %s44
      %s46 = sphi 0, %s44
      %s47 = sphi 0, %s46
      %s61 = sphi 0, %s47
      %s69 = sphi 0, %s71
      %s72 = sphi 0, %s69
      %s73 = sphi 0, %s72
      %s89 = sphi 0, %s73
      %s95 = sphi 0, %s97
      %s98 = sphi 0, %s95
      %s99 = sphi 0, %s98
      %s115 = sphi 0, %s99
      %s121 = sphi 0, %s123
      %s124 = sphi 0, %s121
      %s125 = sphi 0, %s124
      %s141 = sphi 0, %s125
      %s147 = sphi 0, %s149
      %s150 = sphi 0, %s147
      %s151 = sphi 0, %s150
      %s167 = sphi 0, %s151
      %s171 = sphi 0, %s171
      %s173 = sphi 0, %s171
      %s174 = sphi 0, %s173
      %s188 = sphi 0, %s174
      %s192 = sphi 0, %s192
      %s194 = sphi 0, %s192
      %s195 = sphi 0, %s194
      %s209 = sphi 0, %s195
      %s213 = sphi 0, %s213
      %s215 = sphi 0, %s213
      %s216 = sphi 0, %s215
      %s230 = sphi 0, %s216
    $region4: #{tpu_custom_call.1} parent=1 // loop_header_branch
      %27 = sbr.rel (%p25) target = $region8
    $region5: #{tpu_custom_call.1} parent=1 // loop_body
      %s29 = ssub.s32 %s24, 1
      %s30 = ssub.s32 %s24, 2
      %s37 = sadd.s32 1, %s32
      %p38 = scmp.ge.s32.totalorder %s37, 1
      %s39 = scalar_select %p38, 0, %s37
      %s40 = sadd.s32 1, %s31
      %s41 = scalar_select %p38, %s40, %s31
      %p42 = scmp.ge.s32.totalorder %s41, 3
      %s43 = scalar_select %p42, 0, %s41
      %s45 = sadd.s32 %s44, 1
      %p48 = scmp.eq.s32.totalorder %s24, 2
      %p49 = scmp.ne.s32.totalorder %s44, %s46
      %p50 = scmp.eq.s32.totalorder %s24, 0
      %p51 = por %p49, %p50
      %p52 = scmp.ne.s32.totalorder %s44, %s46
      %p53 = scmp.eq.s32.totalorder %s29, 2
      %p54 = por %p52, %p53
      %p55 = scmp.ne.s32.totalorder %s46, %s47
      %p56 = scmp.eq.s32.totalorder %s29, 0
      %p57 = por %p55, %p56
      %p58 = scmp.ne.s32.totalorder %s46, %s47
      %p59 = scmp.eq.s32.totalorder %s30, 2
      %p60 = por %p58, %p59
      %p62 = scmp.ne.s32.totalorder %s47, %s61
      %p63 = scmp.eq.s32.totalorder %s30, 0
      %p64 = por %p62, %p63
      %s65 = ssub.s32 %s31, %s43
      %s66 = ssub.s32 %s32, %s39
      %s67 = sor.u32 %s65, %s66
      %p68 = scmp.eq.s32.totalorder %s67, 0
      %s70 = sadd.s32 %s69, 1
      %s71 = scalar_select %p68, %s69, %s70
      %p74 = pneg %p68
      %p75 = scmp.eq.s32.totalorder %s24, 2
      %p76 = por %p74, %p75
      %p77 = scmp.ne.s32.totalorder %s69, %s72
      %p78 = scmp.eq.s32.totalorder %s24, 0
      %p79 = por %p77, %p78
      %p80 = scmp.ne.s32.totalorder %s69, %s72
      %p81 = scmp.eq.s32.totalorder %s29, 2
      %p82 = por %p80, %p81
      %p83 = scmp.ne.s32.totalorder %s72, %s73
      %p84 = scmp.eq.s32.totalorder %s29, 0
      %p85 = por %p83, %p84
      %p86 = scmp.ne.s32.totalorder %s72, %s73
      %p87 = scmp.eq.s32.totalorder %s30, 2
      %p88 = por %p86, %p87
      %p90 = scmp.ne.s32.totalorder %s73, %s89
      %p91 = scmp.eq.s32.totalorder %s30, 0
      %p92 = por %p90, %p91
      %s93 = ssub.s32 %s31, %s43
      %p94 = scmp.eq.s32.totalorder %s93, 0
      %s96 = sadd.s32 %s95, 1
      %s97 = scalar_select %p94, %s95, %s96
      %p100 = pneg %p94
      %p101 = scmp.eq.s32.totalorder %s24, 2
      %p102 = por %p100, %p101
      %p103 = scmp.ne.s32.totalorder %s95, %s98
      %p104 = scmp.eq.s32.totalorder %s24, 0
      %p105 = por %p103, %p104
      %p106 = scmp.ne.s32.totalorder %s95, %s98
      %p107 = scmp.eq.s32.totalorder %s29, 2
      %p108 = por %p106, %p107
      %p109 = scmp.ne.s32.totalorder %s98, %s99
      %p110 = scmp.eq.s32.totalorder %s29, 0
      %p111 = por %p109, %p110
      %p112 = scmp.ne.s32.totalorder %s98, %s99
      %p113 = scmp.eq.s32.totalorder %s30, 2
      %p114 = por %p112, %p113
      %p116 = scmp.ne.s32.totalorder %s99, %s115
      %p117 = scmp.eq.s32.totalorder %s30, 0
      %p118 = por %p116, %p117
      %s119 = ssub.s32 %s31, %s43
      %p120 = scmp.eq.s32.totalorder %s119, 0
      %s122 = sadd.s32 %s121, 1
      %s123 = scalar_select %p120, %s121, %s122
      %p126 = pneg %p120
      %p127 = scmp.eq.s32.totalorder %s24, 2
      %p128 = por %p126, %p127
      %p129 = scmp.ne.s32.totalorder %s121, %s124
      %p130 = scmp.eq.s32.totalorder %s24, 0
      %p131 = por %p129, %p130
      %p132 = scmp.ne.s32.totalorder %s121, %s124
      %p133 = scmp.eq.s32.totalorder %s29, 2
      %p134 = por %p132, %p133
      %p135 = scmp.ne.s32.totalorder %s124, %s125
      %p136 = scmp.eq.s32.totalorder %s29, 0
      %p137 = por %p135, %p136
      %p138 = scmp.ne.s32.totalorder %s124, %s125
      %p139 = scmp.eq.s32.totalorder %s30, 2
      %p140 = por %p138, %p139
      %p142 = scmp.ne.s32.totalorder %s125, %s141
      %p143 = scmp.eq.s32.totalorder %s30, 0
      %p144 = por %p142, %p143
      %s145 = ssub.s32 %s31, %s43
      %p146 = scmp.eq.s32.totalorder %s145, 0
      %s148 = sadd.s32 %s147, 1
      %s149 = scalar_select %p146, %s147, %s148
      %p152 = pneg %p146
      %p153 = scmp.eq.s32.totalorder %s24, 2
      %p154 = por %p152, %p153
      %p155 = scmp.ne.s32.totalorder %s147, %s150
      %p156 = scmp.eq.s32.totalorder %s24, 0
      %p157 = por %p155, %p156
      %p158 = scmp.ne.s32.totalorder %s147, %s150
      %p159 = scmp.eq.s32.totalorder %s29, 2
      %p160 = por %p158, %p159
      %p161 = scmp.ne.s32.totalorder %s150, %s151
      %p162 = scmp.eq.s32.totalorder %s29, 0
      %p163 = por %p161, %p162
      %p164 = scmp.ne.s32.totalorder %s150, %s151
      %p165 = scmp.eq.s32.totalorder %s30, 2
      %p166 = por %p164, %p165
      %p168 = scmp.ne.s32.totalorder %s151, %s167
      %p169 = scmp.eq.s32.totalorder %s30, 0
      %p170 = por %p168, %p169
      %s172 = sadd.s32 %s171, 1
      %p175 = scmp.eq.s32.totalorder %s24, 2
      %p176 = scmp.ne.s32.totalorder %s171, %s173
      %p177 = scmp.eq.s32.totalorder %s24, 0
      %p178 = por %p176, %p177
      %p179 = scmp.ne.s32.totalorder %s171, %s173
      %p180 = scmp.eq.s32.totalorder %s29, 2
      %p181 = por %p179, %p180
      %p182 = scmp.ne.s32.totalorder %s173, %s174
      %p183 = scmp.eq.s32.totalorder %s29, 0
      %p184 = por %p182, %p183
      %p185 = scmp.ne.s32.totalorder %s173, %s174
      %p186 = scmp.eq.s32.totalorder %s30, 2
      %p187 = por %p185, %p186
      %p189 = scmp.ne.s32.totalorder %s174, %s188
      %p190 = scmp.eq.s32.totalorder %s30, 0
      %p191 = por %p189, %p190
      %s193 = sadd.s32 %s192, 1
      %p196 = scmp.eq.s32.totalorder %s24, 2
      %p197 = scmp.ne.s32.totalorder %s192, %s194
      %p198 = scmp.eq.s32.totalorder %s24, 0
      %p199 = por %p197, %p198
      %p200 = scmp.ne.s32.totalorder %s192, %s194
      %p201 = scmp.eq.s32.totalorder %s29, 2
      %p202 = por %p200, %p201
      %p203 = scmp.ne.s32.totalorder %s194, %s195
      %p204 = scmp.eq.s32.totalorder %s29, 0
      %p205 = por %p203, %p204
      %p206 = scmp.ne.s32.totalorder %s194, %s195
      %p207 = scmp.eq.s32.totalorder %s30, 2
      %p208 = por %p206, %p207
      %p210 = scmp.ne.s32.totalorder %s195, %s209
      %p211 = scmp.eq.s32.totalorder %s30, 0
      %p212 = por %p210, %p211
      %s214 = sadd.s32 %s213, 1
      %p217 = scmp.eq.s32.totalorder %s24, 2
      %p218 = scmp.ne.s32.totalorder %s213, %s215
      %p219 = scmp.eq.s32.totalorder %s24, 0
      %p220 = por %p218, %p219
      %p221 = scmp.ne.s32.totalorder %s213, %s215
      %p222 = scmp.eq.s32.totalorder %s29, 2
      %p223 = por %p221, %p222
      %p224 = scmp.ne.s32.totalorder %s215, %s216
      %p225 = scmp.eq.s32.totalorder %s29, 0
      %p226 = por %p224, %p225
      %p227 = scmp.ne.s32.totalorder %s215, %s216
      %p228 = scmp.eq.s32.totalorder %s30, 2
      %p229 = por %p227, %p228
      %p231 = scmp.ne.s32.totalorder %s216, %s230
      %p232 = scmp.eq.s32.totalorder %s30, 0
      %p233 = por %p231, %p232
      %p234 = scmp.le.s32.totalorder 1, %s24
      %p235 = scmp.lt.s32.totalorder %s24, 4
      %p236 = pnand %p234, %p235
      %p237 = pneg %p236
      // Predicated region
      $region9: #{tpu_custom_call.1} parent=5 // pred_check
        _
      $region10: #{tpu_custom_call.1} parent=5 // pred_check_branch
        %239 = sbr.rel (%p236) target = $region12
      $region11: #{tpu_custom_call.1} parent=5 // pred_region
        %s240 = ssub.s32 %s24, 1
        // Predicated region
        $region13: #{tpu_custom_call.1} parent=11 // pred_check
          %p241 = pneg %p57
        $region14: #{tpu_custom_call.1} parent=11 // pred_check_branch
          %243 = sbr.rel (%p241) target = $region16
        $region15: #{tpu_custom_call.1} parent=11 // pred_region
          %s245 = ssub.s32 1024, 1024
          %246 = vsyncadd [#allocation7], %s245
          %s247 = sshll.u32 [#allocation6], 4
          %s248 = int_to_ptr.vmem [resolvable:$true] %s247
          %253 = dma.hbm_to_vmem [thread:$0]  %s1, 1024, %s248, [#allocation7], 64, 64, 4
        $region16: #{tpu_custom_call.1} parent=11 // pred_fallthru
          _
        // Predicated region
        $region17: #{tpu_custom_call.1} parent=11 // pred_check
          %p254 = pneg %p184
        $region18: #{tpu_custom_call.1} parent=11 // pred_check_branch
          %256 = sbr.rel (%p254) target = $region20
        $region19: #{tpu_custom_call.1} parent=11 // pred_region
          %s258 = ssub.s32 1024, 1024
          %259 = vsyncadd [#allocation13], %s258
          %s260 = sshll.u32 [#allocation12], 4
          %s261 = int_to_ptr.vmem [resolvable:$true] %s260
          %266 = dma.hbm_to_vmem [thread:$0]  %s6, 1024, %s261, [#allocation13], 64, 64, 4
        $region20: #{tpu_custom_call.1} parent=11 // pred_fallthru
          _
        // Predicated region
        $region21: #{tpu_custom_call.1} parent=11 // pred_check
          %p267 = pneg %p205
        $region22: #{tpu_custom_call.1} parent=11 // pred_check_branch
          %269 = sbr.rel (%p267) target = $region24
        $region23: #{tpu_custom_call.1} parent=11 // pred_region
          _
        $region24: #{tpu_custom_call.1} parent=11 // pred_fallthru
          _
      $region12: #{tpu_custom_call.1} parent=5 // pred_fallthru
        _
      %p270 = scmp.lt.s32.totalorder %s24, 3
      // Predicated region
      $region25: #{tpu_custom_call.1} parent=5 // pred_check
        %p271 = pneg %p270
      $region26: #{tpu_custom_call.1} parent=5 // pred_check_branch
        %273 = sbr.rel (%p271) target = $region28
      $region27: #{tpu_custom_call.1} parent=5 // pred_region
        // Predicated region
        $region29: #{tpu_custom_call.1} parent=27 // pred_check
          %p274 = pneg %p79
        $region30: #{tpu_custom_call.1} parent=27 // pred_check_branch
          %276 = sbr.rel (%p274) target = $region32
        $region31: #{tpu_custom_call.1} parent=27 // pred_region
          %s277 = sand.u32 %s24, 1
          %s278 = scalar_lea.sflag [#allocation10], %s277
          %s279 = sand.u32 %s69, 1
          %s280 = smul.addr %s279, 64
          %s281 = scalar_lea.vmem [#allocation9], %s280
          %s283 = ssub.s32 1024, 1024
          %284 = vsyncadd %s278, %s283
          %s285 = smul.addr %s31, 16
          %s286 = sadd.s32 %s32, %s285
          %s287 = smul.addr %s286, 64
          %s288 = scalar_lea.hbm %s2, %s287
          %s289 = sshll.u32 %s281, 4
          %s290 = int_to_ptr.vmem [resolvable:$true] %s289
          %295 = dma.hbm_to_vmem [thread:$0]  %s288, 1024, %s290, %s278, 64, 64, 4
        $region32: #{tpu_custom_call.1} parent=27 // pred_fallthru
          _
        // Predicated region
        $region33: #{tpu_custom_call.1} parent=27 // pred_check
          %p296 = pneg %p105
        $region34: #{tpu_custom_call.1} parent=27 // pred_check_branch
          %298 = sbr.rel (%p296) target = $region36
        $region35: #{tpu_custom_call.1} parent=27 // pred_region
          %s299 = sand.u32 %s24, 1
          %s300 = scalar_lea.sflag [#allocation10], %s299
          %s301 = sand.u32 %s95, 1
          %s302 = smul.addr %s301, 64
          %s303 = scalar_lea.vmem [#allocation11], %s302
          %s305 = ssub.s32 1024, 1024
          %306 = vsyncadd %s300, %s305
          %s307 = smul.addr %s31, 16
          %s308 = smul.addr %s307, 64
          %s309 = scalar_lea.hbm %s3, %s308
          %s310 = sshll.u32 %s303, 4
          %s311 = int_to_ptr.vmem [resolvable:$true] %s310
          %316 = dma.hbm_to_vmem [thread:$0]  %s309, 1024, %s311, %s300, 64, 64, 4
        $region36: #{tpu_custom_call.1} parent=27 // pred_fallthru
          _
        // Predicated region
        $region37: #{tpu_custom_call.1} parent=27 // pred_check
          %p317 = pneg %p131
        $region38: #{tpu_custom_call.1} parent=27 // pred_check_branch
          %319 = sbr.rel (%p317) target = $region40
        $region39: #{tpu_custom_call.1} parent=27 // pred_region
          %p320 = scmp.lt.s32.totalorder %s31, 2
          %s321 = scalar_select %p320, %s31, 2
          %s322 = scalar_lea.vmem %s4, %s321
        $region40: #{tpu_custom_call.1} parent=27 // pred_fallthru
          _
        // Predicated region
        $region41: #{tpu_custom_call.1} parent=27 // pred_check
          %p323 = pneg %p157
        $region42: #{tpu_custom_call.1} parent=27 // pred_check_branch
          %325 = sbr.rel (%p323) target = $region44
        $region43: #{tpu_custom_call.1} parent=27 // pred_region
          %p326 = scmp.lt.s32.totalorder %s31, 2
          %s327 = scalar_select %p326, %s31, 2
          %s328 = scalar_lea.vmem %s5, %s327
        $region44: #{tpu_custom_call.1} parent=27 // pred_fallthru
          _
      $region28: #{tpu_custom_call.1} parent=5 // pred_fallthru
        _
      %p329 = scmp.le.s32.totalorder 1, %s24
      %p330 = scmp.lt.s32.totalorder %s24, 4
      %p331 = pnand %p329, %p330
      %p332 = pneg %p331
      // Predicated region
      $region45: #{tpu_custom_call.1} parent=5 // pred_check
        _
      $region46: #{tpu_custom_call.1} parent=5 // pred_check_branch
        %334 = sbr.rel (%p331) target = $region48
      $region47: #{tpu_custom_call.1} parent=5 // pred_region
        %s335 = ssub.s32 %s24, 1
        // Predicated region
        $region49: #{tpu_custom_call.1} parent=47 // pred_check
          %p336 = pneg %p57
        $region50: #{tpu_custom_call.1} parent=47 // pred_check_branch
          %338 = sbr.rel (%p336) target = $region52
        $region51: #{tpu_custom_call.1} parent=47 // pred_region
          %339 = dma.done [#allocation7], 1024
        $region52: #{tpu_custom_call.1} parent=47 // pred_fallthru
          _
        %s340 = sand.u32 %s29, 1
        %s341 = scalar_lea.sflag [#allocation10], %s340
        %s342 = sand.u32 %s72, 1
        %s343 = smul.addr %s342, 64
        %s344 = scalar_lea.vmem [#allocation9], %s343
        // Predicated region
        $region53: #{tpu_custom_call.1} parent=47 // pred_check
          %p345 = pneg %p85
        $region54: #{tpu_custom_call.1} parent=47 // pred_check_branch
          %347 = sbr.rel (%p345) target = $region56
        $region55: #{tpu_custom_call.1} parent=47 // pred_region
          %348 = dma.done %s341, 1024
        $region56: #{tpu_custom_call.1} parent=47 // pred_fallthru
          _
        %s349 = sand.u32 %s29, 1
        %s350 = scalar_lea.sflag [#allocation10], %s349
        %s351 = sand.u32 %s98, 1
        %s352 = smul.addr %s351, 64
        %s353 = scalar_lea.vmem [#allocation11], %s352
        // Predicated region
        $region57: #{tpu_custom_call.1} parent=47 // pred_check
          %p354 = pneg %p111
        $region58: #{tpu_custom_call.1} parent=47 // pred_check_branch
          %356 = sbr.rel (%p354) target = $region60
        $region59: #{tpu_custom_call.1} parent=47 // pred_region
          %357 = dma.done %s350, 1024
        $region60: #{tpu_custom_call.1} parent=47 // pred_fallthru
          _
        // Predicated region
        $region61: #{tpu_custom_call.1} parent=47 // pred_check
          %p358 = pneg %p184
        $region62: #{tpu_custom_call.1} parent=47 // pred_check_branch
          %360 = sbr.rel (%p358) target = $region64
        $region63: #{tpu_custom_call.1} parent=47 // pred_region
          %361 = dma.done [#allocation13], 1024
        $region64: #{tpu_custom_call.1} parent=47 // pred_fallthru
          _
        %p362 = pneg %p57
        %p363 = pneg %p54
        %s364 = sand.u32 %s29, 1
        %s365 = scalar_lea.sflag [#allocation10], %s364
        %s366 = sand.u32 %s72, 1
        %s367 = smul.addr %s366, 64
        %s368 = scalar_lea.vmem [#allocation9], %s367
        %p369 = pneg %p85
        %p370 = pneg %p82
        %s371 = sand.u32 %s29, 1
        %s372 = scalar_lea.sflag [#allocation10], %s371
        %s373 = sand.u32 %s98, 1
        %s374 = smul.addr %s373, 64
        %s375 = scalar_lea.vmem [#allocation11], %s374
        %p376 = pneg %p111
        %p377 = pneg %p108
        %p378 = scmp.lt.s32.totalorder %s33, 2
        %s379 = scalar_select %p378, %s33, 2
        %s380 = scalar_lea.vmem %s4, %s379
        %p381 = pneg %p137
        %p382 = pneg %p134
        %p383 = scmp.lt.s32.totalorder %s33, 2
        %s384 = scalar_select %p383, %s33, 2
        %s385 = scalar_lea.vmem %s5, %s384
        %p386 = pneg %p163
        %p387 = pneg %p160
        %p388 = pneg %p184
        %p389 = pneg %p181
        %p390 = pneg %p205
        %p391 = pneg %p202
        %p392 = pneg %p226
        %p393 = pneg %p223
        %p394 = scmp.lt.s32.totalorder %s33, 2
        %s395 = scalar_select %p394, %s33, 2
        %s396 = scalar_lea.vmem %s4, %s395
        %p397 = scmp.lt.s32.totalorder %s33, 2
        %s398 = scalar_select %p397, %s33, 2
        %s399 = scalar_lea.vmem %s5, %s398
        %p401 = scmp.eq.s32.totalorder %s33, 0
        %p402 = scmp.eq.s32.totalorder %s34, 0
        %p403 = pnand %p401, %p402
        %p404 = pneg %p403
        // Predicated region
        $region65: #{tpu_custom_call.1} parent=47 // pred_check
          _
        $region66: #{tpu_custom_call.1} parent=47 // pred_check_branch
          %406 = sbr.rel (%p403) target = $region68
        $region67: #{tpu_custom_call.1} parent=47 // pred_region
          %v407 = vld [vmem:[#allocation6] sm:$0xf]
          %v408 = vld [vmem:[#allocation6 + $0x4] sm:$0xf]
          %v409 = vld [vmem:[#allocation6 + $0x8] sm:$0xf]
          %v410 = vld [vmem:[#allocation6 + $0xc] sm:$0xf]
          %v411 = vld [vmem:[#allocation6 + $0x10] sm:$0xf]
          %v412 = vld [vmem:[#allocation6 + $0x14] sm:$0xf]
          %v413 = vld [vmem:[#allocation6 + $0x18] sm:$0xf]
          %v414 = vld [vmem:[#allocation6 + $0x1c] sm:$0xf]
          %v415 = vld [vmem:[#allocation6 + $0x20] sm:$0xf]
          %v416 = vld [vmem:[#allocation6 + $0x24] sm:$0xf]
          %v417 = vld [vmem:[#allocation6 + $0x28] sm:$0xf]
          %v418 = vld [vmem:[#allocation6 + $0x2c] sm:$0xf]
          %v419 = vld [vmem:[#allocation6 + $0x30] sm:$0xf]
          %v420 = vld [vmem:[#allocation6 + $0x34] sm:$0xf]
          %v421 = vld [vmem:[#allocation6 + $0x38] sm:$0xf]
          %v422 = vld [vmem:[#allocation6 + $0x3c] sm:$0xf]
          %v439 = vunpack.c.l.b16 %v407
          %v440 = vunpack.c.l.b16 %v408
          %v441 = vunpack.c.l.b16 %v409
          %v442 = vunpack.c.l.b16 %v410
          %v443 = vunpack.c.l.b16 %v411
          %v444 = vunpack.c.l.b16 %v412
          %v445 = vunpack.c.l.b16 %v413
          %v446 = vunpack.c.l.b16 %v414
          %v447 = vunpack.c.l.b16 %v415
          %v448 = vunpack.c.l.b16 %v416
          %v449 = vunpack.c.l.b16 %v417
          %v450 = vunpack.c.l.b16 %v418
          %v451 = vunpack.c.l.b16 %v419
          %v452 = vunpack.c.l.b16 %v420
          %v453 = vunpack.c.l.b16 %v421
          %v454 = vunpack.c.l.b16 %v422
          %v455 = vpack.c.b16 %v440, %v439
          %v456 = vpack.c.b16 %v442, %v441
          %v457 = vpack.c.b16 %v444, %v443
          %v458 = vpack.c.b16 %v446, %v445
          %v459 = vpack.c.b16 %v448, %v447
          %v460 = vpack.c.b16 %v450, %v449
          %v461 = vpack.c.b16 %v452, %v451
          %v462 = vpack.c.b16 %v454, %v453
          %471 = vst [vmem:[#allocation2] sm:$0xff] %v455
          %472 = vst [vmem:[#allocation2 + $0x8] sm:$0xff] %v456
          %473 = vst [vmem:[#allocation2 + $0x10] sm:$0xff] %v457
          %474 = vst [vmem:[#allocation2 + $0x18] sm:$0xff] %v458
          %475 = vst [vmem:[#allocation2 + $0x20] sm:$0xff] %v459
          %476 = vst [vmem:[#allocation2 + $0x28] sm:$0xff] %v460
          %477 = vst [vmem:[#allocation2 + $0x30] sm:$0xff] %v461
          %478 = vst [vmem:[#allocation2 + $0x38] sm:$0xff] %v462
        $region68: #{tpu_custom_call.1} parent=47 // pred_fallthru
          _
        // Predicated region
        $region69: #{tpu_custom_call.1} parent=47 // pred_check
          %p479 = pneg %p402
        $region70: #{tpu_custom_call.1} parent=47 // pred_check_branch
          %481 = sbr.rel (%p479) target = $region72
        $region71: #{tpu_custom_call.1} parent=47 // pred_region
          %482 = vst [vmem:[#allocation3] sm:$0xff] 0.0
          %483 = vst [vmem:[#allocation3 + $0x8] sm:$0xff] 0.0
          %484 = vst [vmem:[#allocation3 + $0x10] sm:$0xff] 0.0
          %485 = vst [vmem:[#allocation3 + $0x18] sm:$0xff] 0.0
          %486 = vst [vmem:[#allocation3 + $0x20] sm:$0xff] 0.0
          %487 = vst [vmem:[#allocation3 + $0x28] sm:$0xff] 0.0
          %488 = vst [vmem:[#allocation3 + $0x30] sm:$0xff] 0.0
          %489 = vst [vmem:[#allocation3 + $0x38] sm:$0xff] 0.0
          %490 = vst [vmem:[#allocation3 + $0x40] sm:$0xff] 0.0
          %491 = vst [vmem:[#allocation3 + $0x48] sm:$0xff] 0.0
          %492 = vst [vmem:[#allocation3 + $0x50] sm:$0xff] 0.0
          %493 = vst [vmem:[#allocation3 + $0x58] sm:$0xff] 0.0
          %494 = vst [vmem:[#allocation3 + $0x60] sm:$0xff] 0.0
          %495 = vst [vmem:[#allocation3 + $0x68] sm:$0xff] 0.0
          %496 = vst [vmem:[#allocation3 + $0x70] sm:$0xff] 0.0
          %497 = vst [vmem:[#allocation3 + $0x78] sm:$0xff] 0.0
        $region72: #{tpu_custom_call.1} parent=47 // pred_fallthru
          _
        %s498 = smul.u32 %s34, 128
        %v499 = vld [vmem:[#allocation3] sm:$0xff]
        %v500 = vld [vmem:[#allocation3 + $0x8] sm:$0xff]
        %v501 = vld [vmem:[#allocation3 + $0x10] sm:$0xff]
        %v502 = vld [vmem:[#allocation3 + $0x18] sm:$0xff]
        %v503 = vld [vmem:[#allocation3 + $0x20] sm:$0xff]
        %v504 = vld [vmem:[#allocation3 + $0x28] sm:$0xff]
        %v505 = vld [vmem:[#allocation3 + $0x30] sm:$0xff]
        %v506 = vld [vmem:[#allocation3 + $0x38] sm:$0xff]
        %v507 = vld [vmem:[#allocation3 + $0x40] sm:$0xff]
        %v508 = vld [vmem:[#allocation3 + $0x48] sm:$0xff]
        %v509 = vld [vmem:[#allocation3 + $0x50] sm:$0xff]
        %v510 = vld [vmem:[#allocation3 + $0x58] sm:$0xff]
        %v511 = vld [vmem:[#allocation3 + $0x60] sm:$0xff]
        %v512 = vld [vmem:[#allocation3 + $0x68] sm:$0xff]
        %v513 = vld [vmem:[#allocation3 + $0x70] sm:$0xff]
        %v514 = vld [vmem:[#allocation3 + $0x78] sm:$0xff]
        %v515 = vld [vmem:[%s344] sm:$0xf]
        %v516 = vld [vmem:[%s344 + $0x4] sm:$0xf]
        %v517 = vld [vmem:[%s344 + $0x8] sm:$0xf]
        %v518 = vld [vmem:[%s344 + $0xc] sm:$0xf]
        %v519 = vld [vmem:[%s344 + $0x10] sm:$0xf]
        %v520 = vld [vmem:[%s344 + $0x14] sm:$0xf]
        %v521 = vld [vmem:[%s344 + $0x18] sm:$0xf]
        %v522 = vld [vmem:[%s344 + $0x1c] sm:$0xf]
        %v523 = vld [vmem:[%s344 + $0x20] sm:$0xf]
        %v524 = vld [vmem:[%s344 + $0x24] sm:$0xf]
        %v525 = vld [vmem:[%s344 + $0x28] sm:$0xf]
        %v526 = vld [vmem:[%s344 + $0x2c] sm:$0xf]
        %v527 = vld [vmem:[%s344 + $0x30] sm:$0xf]
        %v528 = vld [vmem:[%s344 + $0x34] sm:$0xf]
        %v529 = vld [vmem:[%s344 + $0x38] sm:$0xf]
        %v530 = vld [vmem:[%s344 + $0x3c] sm:$0xf]
        %s531 = sshra.s32 %s498, 4
        %s532 = sand.u32 %s498, 15
        %s533 = smul.addr %s531, 8
        %s534 = scalar_lea.vmem [#allocation2], %s533
        %v535 = vld [vmem:[%s534] sm:$0xff]
        %v536 = vld [vmem:[%s534 + $0x8] sm:$0xff]
        %v537 = vld [vmem:[%s534 + $0x10] sm:$0xff]
        %v538 = vld [vmem:[%s534 + $0x18] sm:$0xff]
        %v539 = vld [vmem:[%s534 + $0x20] sm:$0xff]
        %v540 = vld [vmem:[%s534 + $0x28] sm:$0xff]
        %v541 = vld [vmem:[%s534 + $0x30] sm:$0xff]
        %v542 = vld [vmem:[%s534 + $0x38] sm:$0xff]
        %v559 = vunpack.c.l.b16 %v515
        %v560 = vunpack.c.l.b16 %v516
        %v561 = vunpack.c.l.b16 %v517
        %v562 = vunpack.c.l.b16 %v518
        %v563 = vunpack.c.l.b16 %v519
        %v564 = vunpack.c.l.b16 %v520
        %v565 = vunpack.c.l.b16 %v521
        %v566 = vunpack.c.l.b16 %v522
        %v567 = vunpack.c.l.b16 %v523
        %v568 = vunpack.c.l.b16 %v524
        %v569 = vunpack.c.l.b16 %v525
        %v570 = vunpack.c.l.b16 %v526
        %v571 = vunpack.c.l.b16 %v527
        %v572 = vunpack.c.l.b16 %v528
        %v573 = vunpack.c.l.b16 %v529
        %v574 = vunpack.c.l.b16 %v530
        %v575 = vpack.c.b16 %v560, %v559
        %v576 = vpack.c.b16 %v562, %v561
        %v577 = vpack.c.b16 %v564, %v563
        %v578 = vpack.c.b16 %v566, %v565
        %v579 = vpack.c.b16 %v568, %v567
        %v580 = vpack.c.b16 %v570, %v569
        %v581 = vpack.c.b16 %v572, %v571
        %v582 = vpack.c.b16 %v574, %v573
        %591 = vmatprep.subr.bf16.mxu0 0
        %592 = vmatpush1.bf16.msra.mxu0 %v535
        %593 = vmatprep.subr.bf16.mxu0 0
        %594 = vmatpush1.bf16.msra.mxu0 %v536
        %595 = vmatprep.subr.bf16.mxu0 0
        %596 = vmatpush1.bf16.msra.mxu0 %v537
        %597 = vmatprep.subr.bf16.mxu0 0
        %598 = vmatpush1.bf16.msra.mxu0 %v538
        %599 = vmatprep.subr.bf16.mxu0 0
        %600 = vmatpush1.bf16.msra.mxu0 %v539
        %601 = vmatprep.subr.bf16.mxu0 0
        %602 = vmatpush1.bf16.msra.mxu0 %v540
        %603 = vmatprep.subr.bf16.mxu0 0
        %604 = vmatpush1.bf16.msra.mxu0 %v541
        %605 = vmatprep.subr.bf16.mxu0 0
        %606 = vmatpush1.bf16.msra.mxu0 %v542
        %607 = vmatprep.subr.bf16.mxu0 0
        %608 = vmatpush1.bf16.msra.mxu0 0
        %609 = vmatprep.subr.bf16.mxu0 0
        %610 = vmatpush1.bf16.msra.mxu0 0
        %611 = vmatprep.subr.bf16.mxu0 0
        %612 = vmatpush1.bf16.msra.mxu0 0
        %613 = vmatprep.subr.bf16.mxu0 0
        %614 = vmatpush1.bf16.msra.mxu0 0
        %615 = vmatprep.subr.bf16.mxu0 0
        %616 = vmatpush1.bf16.msra.mxu0 0
        %617 = vmatprep.subr.bf16.mxu0 0
        %618 = vmatpush1.bf16.msra.mxu0 0
        %619 = vmatprep.subr.bf16.mxu0 0
        %620 = vmatpush1.bf16.msra.mxu0 0
        %621 = vmatprep.subr.bf16.mxu0 0
        %622 = vmatpush1.bf16.msra.mxu0 0
        %623 = vmatprep.mubr.bf16.mxu0 0
        %624 = vmatmul.mubr.bf16.gmra.mrb[0].mxu0 %v575
        %v625 = vpop.f32.mrb[0].mxu0
        %v626 = vadd.f32 0.0, %v625
        %v627 = vpop.f32.mrb[0].mxu0
        %v628 = vpop.f32.mrb[0].mxu0
        %v629 = vadd.f32 0.0, %v628
        %v630 = vpop.f32.mrb[0].mxu0
        %631 = vmatprep.mubr.bf16.mxu0 0
        %632 = vmatmul.mubr.bf16.gmra.mrb[0].mxu0 %v576
        %v633 = vpop.f32.mrb[0].mxu0
        %v634 = vadd.f32 0.0, %v633
        %v635 = vpop.f32.mrb[0].mxu0
        %v636 = vpop.f32.mrb[0].mxu0
        %v637 = vadd.f32 0.0, %v636
        %v638 = vpop.f32.mrb[0].mxu0
        %639 = vmatprep.mubr.bf16.mxu0 0
        %640 = vmatmul.mubr.bf16.gmra.mrb[0].mxu0 %v577
        %v641 = vpop.f32.mrb[0].mxu0
        %v642 = vadd.f32 0.0, %v641
        %v643 = vpop.f32.mrb[0].mxu0
        %v644 = vpop.f32.mrb[0].mxu0
        %v645 = vadd.f32 0.0, %v644
        %v646 = vpop.f32.mrb[0].mxu0
        %647 = vmatprep.mubr.bf16.mxu0 0
        %648 = vmatmul.mubr.bf16.gmra.mrb[0].mxu0 %v578
        %v649 = vpop.f32.mrb[0].mxu0
        %v650 = vadd.f32 0.0, %v649
        %v651 = vpop.f32.mrb[0].mxu0
        %v652 = vpop.f32.mrb[0].mxu0
        %v653 = vadd.f32 0.0, %v652
        %v654 = vpop.f32.mrb[0].mxu0
        %655 = vmatprep.mubr.bf16.mxu0 0
        %656 = vmatmul.mubr.bf16.gmra.mrb[0].mxu0 %v579
        %v657 = vpop.f32.mrb[0].mxu0
        %v658 = vadd.f32 0.0, %v657
        %v659 = vpop.f32.mrb[0].mxu0
        %v660 = vpop.f32.mrb[0].mxu0
        %v661 = vadd.f32 0.0, %v660
        %v662 = vpop.f32.mrb[0].mxu0
        %663 = vmatprep.mubr.bf16.mxu0 0
        %664 = vmatmul.mubr.bf16.gmra.mrb[0].mxu0 %v580
        %v665 = vpop.f32.mrb[0].mxu0
        %v666 = vadd.f32 0.0, %v665
        %v667 = vpop.f32.mrb[0].mxu0
        %v668 = vpop.f32.mrb[0].mxu0
        %v669 = vadd.f32 0.0, %v668
        %v670 = vpop.f32.mrb[0].mxu0
        %671 = vmatprep.mubr.bf16.mxu0 0
        %672 = vmatmul.mubr.bf16.gmra.mrb[0].mxu0 %v581
        %v673 = vpop.f32.mrb[0].mxu0
        %v674 = vadd.f32 0.0, %v673
        %v675 = vpop.f32.mrb[0].mxu0
        %v676 = vpop.f32.mrb[0].mxu0
        %v677 = vadd.f32 0.0, %v676
        %v678 = vpop.f32.mrb[0].mxu0
        %679 = vmatprep.mubr.bf16.mxu0 0
        %680 = vmatmul.mubr.bf16.gmra.mrb[0].mxu0 %v582
        %v681 = vpop.f32.mrb[0].mxu0
        %v682 = vadd.f32 0.0, %v681
        %v683 = vpop.f32.mrb[0].mxu0
        %v684 = vpop.f32.mrb[0].mxu0
        %v685 = vadd.f32 0.0, %v684
        %v686 = vpop.f32.mrb[0].mxu0
        %687 = vdwg.mxu0
        %v688 = vadd.f32 %v499, %v626
        %v689 = vadd.f32 %v500, %v629
        %v690 = vadd.f32 %v501, %v634
        %v691 = vadd.f32 %v502, %v637
        %v692 = vadd.f32 %v503, %v642
        %v693 = vadd.f32 %v504, %v645
        %v694 = vadd.f32 %v505, %v650
        %v695 = vadd.f32 %v506, %v653
        %v696 = vadd.f32 %v507, %v658
        %v697 = vadd.f32 %v508, %v661
        %v698 = vadd.f32 %v509, %v666
        %v699 = vadd.f32 %v510, %v669
        %v700 = vadd.f32 %v511, %v674
        %v701 = vadd.f32 %v512, %v677
        %v702 = vadd.f32 %v513, %v682
        %v703 = vadd.f32 %v514, %v685
        %704 = vst [vmem:[#allocation3] sm:$0xff] %v688
        %705 = vst [vmem:[#allocation3 + $0x8] sm:$0xff] %v689
        %706 = vst [vmem:[#allocation3 + $0x10] sm:$0xff] %v690
        %707 = vst [vmem:[#allocation3 + $0x18] sm:$0xff] %v691
        %708 = vst [vmem:[#allocation3 + $0x20] sm:$0xff] %v692
        %709 = vst [vmem:[#allocation3 + $0x28] sm:$0xff] %v693
        %710 = vst [vmem:[#allocation3 + $0x30] sm:$0xff] %v694
        %711 = vst [vmem:[#allocation3 + $0x38] sm:$0xff] %v695
        %712 = vst [vmem:[#allocation3 + $0x40] sm:$0xff] %v696
        %713 = vst [vmem:[#allocation3 + $0x48] sm:$0xff] %v697
        %714 = vst [vmem:[#allocation3 + $0x50] sm:$0xff] %v698
        %715 = vst [vmem:[#allocation3 + $0x58] sm:$0xff] %v699
        %716 = vst [vmem:[#allocation3 + $0x60] sm:$0xff] %v700
        %717 = vst [vmem:[#allocation3 + $0x68] sm:$0xff] %v701
        %718 = vst [vmem:[#allocation3 + $0x70] sm:$0xff] %v702
        %719 = vst [vmem:[#allocation3 + $0x78] sm:$0xff] %v703
        // Predicated region
        $region73: #{tpu_custom_call.1} parent=47 // pred_check
          %p720 = pneg %p402
        $region74: #{tpu_custom_call.1} parent=47 // pred_check_branch
          %722 = sbr.rel (%p720) target = $region76
        $region75: #{tpu_custom_call.1} parent=47 // pred_region
          %s723 = sld [smem:[#allocation5 + %s33]]
          %v724 = vld [vmem:[#allocation3] sm:$0xff]
          %v725 = vld [vmem:[#allocation3 + $0x8] sm:$0xff]
          %v726 = vld [vmem:[#allocation3 + $0x10] sm:$0xff]
          %v727 = vld [vmem:[#allocation3 + $0x18] sm:$0xff]
          %v728 = vld [vmem:[#allocation3 + $0x20] sm:$0xff]
          %v729 = vld [vmem:[#allocation3 + $0x28] sm:$0xff]
          %v730 = vld [vmem:[#allocation3 + $0x30] sm:$0xff]
          %v731 = vld [vmem:[#allocation3 + $0x38] sm:$0xff]
          %v732 = vld [vmem:[#allocation3 + $0x40] sm:$0xff]
          %v733 = vld [vmem:[#allocation3 + $0x48] sm:$0xff]
          %v734 = vld [vmem:[#allocation3 + $0x50] sm:$0xff]
          %v735 = vld [vmem:[#allocation3 + $0x58] sm:$0xff]
          %v736 = vld [vmem:[#allocation3 + $0x60] sm:$0xff]
          %v737 = vld [vmem:[#allocation3 + $0x68] sm:$0xff]
          %v738 = vld [vmem:[#allocation3 + $0x70] sm:$0xff]
          %v739 = vld [vmem:[#allocation3 + $0x78] sm:$0xff]
          %v740 = vmul.f32 %v724, 0.9
          %v741 = vmul.f32 %v725, 0.9
          %v742 = vmul.f32 %v726, 0.9
          %v743 = vmul.f32 %v727, 0.9
          %v744 = vmul.f32 %v728, 0.9
          %v745 = vmul.f32 %v729, 0.9
          %v746 = vmul.f32 %v730, 0.9
          %v747 = vmul.f32 %v731, 0.9
          %v748 = vmul.f32 %v732, 0.9
          %v749 = vmul.f32 %v733, 0.9
          %v750 = vmul.f32 %v734, 0.9
          %v751 = vmul.f32 %v735, 0.9
          %v752 = vmul.f32 %v736, 0.9
          %v753 = vmul.f32 %v737, 0.9
          %v754 = vmul.f32 %v738, 0.9
          %v755 = vmul.f32 %v739, 0.9
          %v756 = vld [vmem:[#allocation6] sm:$0xf]
          %v757 = vld [vmem:[#allocation6 + $0x4] sm:$0xf]
          %v758 = vld [vmem:[#allocation6 + $0x8] sm:$0xf]
          %v759 = vld [vmem:[#allocation6 + $0xc] sm:$0xf]
          %v760 = vld [vmem:[#allocation6 + $0x10] sm:$0xf]
          %v761 = vld [vmem:[#allocation6 + $0x14] sm:$0xf]
          %v762 = vld [vmem:[#allocation6 + $0x18] sm:$0xf]
          %v763 = vld [vmem:[#allocation6 + $0x1c] sm:$0xf]
          %v764 = vld [vmem:[#allocation6 + $0x20] sm:$0xf]
          %v765 = vld [vmem:[#allocation6 + $0x24] sm:$0xf]
          %v766 = vld [vmem:[#allocation6 + $0x28] sm:$0xf]
          %v767 = vld [vmem:[#allocation6 + $0x2c] sm:$0xf]
          %v768 = vld [vmem:[#allocation6 + $0x30] sm:$0xf]
          %v769 = vld [vmem:[#allocation6 + $0x34] sm:$0xf]
          %v770 = vld [vmem:[#allocation6 + $0x38] sm:$0xf]
          %v771 = vld [vmem:[#allocation6 + $0x3c] sm:$0xf]
          %v772 = vunpack.c.l.bf16 %v756
          %v773 = vunpack.c.l.bf16 %v757
          %v774 = vunpack.c.l.bf16 %v758
          %v775 = vunpack.c.l.bf16 %v759
          %v776 = vunpack.c.l.bf16 %v760
          %v777 = vunpack.c.l.bf16 %v761
          %v778 = vunpack.c.l.bf16 %v762
          %v779 = vunpack.c.l.bf16 %v763
          %v780 = vunpack.c.l.bf16 %v764
          %v781 = vunpack.c.l.bf16 %v765
          %v782 = vunpack.c.l.bf16 %v766
          %v783 = vunpack.c.l.bf16 %v767
          %v784 = vunpack.c.l.bf16 %v768
          %v785 = vunpack.c.l.bf16 %v769
          %v786 = vunpack.c.l.bf16 %v770
          %v787 = vunpack.c.l.bf16 %v771
          %v788 = vmul.f32 %v772, 0.1
          %v789 = vmul.f32 %v773, 0.1
          %v790 = vmul.f32 %v774, 0.1
          %v791 = vmul.f32 %v775, 0.1
          %v792 = vmul.f32 %v776, 0.1
          %v793 = vmul.f32 %v777, 0.1
          %v794 = vmul.f32 %v778, 0.1
          %v795 = vmul.f32 %v779, 0.1
          %v796 = vmul.f32 %v780, 0.1
          %v797 = vmul.f32 %v781, 0.1
          %v798 = vmul.f32 %v782, 0.1
          %v799 = vmul.f32 %v783, 0.1
          %v800 = vmul.f32 %v784, 0.1
          %v801 = vmul.f32 %v785, 0.1
          %v802 = vmul.f32 %v786, 0.1
          %v803 = vmul.f32 %v787, 0.1
          %v804 = vadd.f32 %v740, %v788
          %v805 = vadd.f32 %v741, %v789
          %v806 = vadd.f32 %v742, %v790
          %v807 = vadd.f32 %v743, %v791
          %v808 = vadd.f32 %v744, %v792
          %v809 = vadd.f32 %v745, %v793
          %v810 = vadd.f32 %v746, %v794
          %v811 = vadd.f32 %v747, %v795
          %v812 = vadd.f32 %v748, %v796
          %v813 = vadd.f32 %v749, %v797
          %v814 = vadd.f32 %v750, %v798
          %v815 = vadd.f32 %v751, %v799
          %v816 = vadd.f32 %v752, %v800
          %v817 = vadd.f32 %v753, %v801
          %v818 = vadd.f32 %v754, %v802
          %v819 = vadd.f32 %v755, %v803
          %s820 = ssub.f32 1.0, %s723
          %v821 = vstv %s820
          %v822 = vmul.f32 %v821, %v804
          %v823 = vmul.f32 %v821, %v805
          %v824 = vmul.f32 %v821, %v806
          %v825 = vmul.f32 %v821, %v807
          %v826 = vmul.f32 %v821, %v808
          %v827 = vmul.f32 %v821, %v809
          %v828 = vmul.f32 %v821, %v810
          %v829 = vmul.f32 %v821, %v811
          %v830 = vmul.f32 %v821, %v812
          %v831 = vmul.f32 %v821, %v813
          %v832 = vmul.f32 %v821, %v814
          %v833 = vmul.f32 %v821, %v815
          %v834 = vmul.f32 %v821, %v816
          %v835 = vmul.f32 %v821, %v817
          %v836 = vmul.f32 %v821, %v818
          %v837 = vmul.f32 %v821, %v819
          %v838 = vpack.c.bf16 %v805, %v804
          %v839 = vpack.c.bf16 %v807, %v806
          %v840 = vpack.c.bf16 %v809, %v808
          %v841 = vpack.c.bf16 %v811, %v810
          %v842 = vpack.c.bf16 %v813, %v812
          %v843 = vpack.c.bf16 %v815, %v814
          %v844 = vpack.c.bf16 %v817, %v816
          %v845 = vpack.c.bf16 %v819, %v818
          %v846 = vld [vmem:[%s353] sm:$0xf]
          %v847 = vld [vmem:[%s353 + $0x4] sm:$0xf]
          %v848 = vld [vmem:[%s353 + $0x8] sm:$0xf]
          %v849 = vld [vmem:[%s353 + $0xc] sm:$0xf]
          %v850 = vld [vmem:[%s353 + $0x10] sm:$0xf]
          %v851 = vld [vmem:[%s353 + $0x14] sm:$0xf]
          %v852 = vld [vmem:[%s353 + $0x18] sm:$0xf]
          %v853 = vld [vmem:[%s353 + $0x1c] sm:$0xf]
          %v854 = vld [vmem:[%s353 + $0x20] sm:$0xf]
          %v855 = vld [vmem:[%s353 + $0x24] sm:$0xf]
          %v856 = vld [vmem:[%s353 + $0x28] sm:$0xf]
          %v857 = vld [vmem:[%s353 + $0x2c] sm:$0xf]
          %v858 = vld [vmem:[%s353 + $0x30] sm:$0xf]
          %v859 = vld [vmem:[%s353 + $0x34] sm:$0xf]
          %v860 = vld [vmem:[%s353 + $0x38] sm:$0xf]
          %v861 = vld [vmem:[%s353 + $0x3c] sm:$0xf]
          %v878 = vunpack.c.l.b16 %v846
          %v879 = vunpack.c.l.b16 %v847
          %v880 = vunpack.c.l.b16 %v848
          %v881 = vunpack.c.l.b16 %v849
          %v882 = vunpack.c.l.b16 %v850
          %v883 = vunpack.c.l.b16 %v851
          %v884 = vunpack.c.l.b16 %v852
          %v885 = vunpack.c.l.b16 %v853
          %v886 = vunpack.c.l.b16 %v854
          %v887 = vunpack.c.l.b16 %v855
          %v888 = vunpack.c.l.b16 %v856
          %v889 = vunpack.c.l.b16 %v857
          %v890 = vunpack.c.l.b16 %v858
          %v891 = vunpack.c.l.b16 %v859
          %v892 = vunpack.c.l.b16 %v860
          %v893 = vunpack.c.l.b16 %v861
          %v894 = vpack.c.b16 %v879, %v878
          %v895 = vpack.c.b16 %v881, %v880
          %v896 = vpack.c.b16 %v883, %v882
          %v897 = vpack.c.b16 %v885, %v884
          %v898 = vpack.c.b16 %v887, %v886
          %v899 = vpack.c.b16 %v889, %v888
          %v900 = vpack.c.b16 %v891, %v890
          %v901 = vpack.c.b16 %v893, %v892
          %910 = vmatprep.subr.bf16.mxu0 0
          %911 = vmatpush1.bf16.msra.mxu0 %v894
          %912 = vmatprep.subr.bf16.mxu0 0
          %913 = vmatpush1.bf16.msra.mxu0 %v895
          %914 = vmatprep.subr.bf16.mxu0 0
          %915 = vmatpush1.bf16.msra.mxu0 %v896
          %916 = vmatprep.subr.bf16.mxu0 0
          %917 = vmatpush1.bf16.msra.mxu0 %v897
          %918 = vmatprep.subr.bf16.mxu0 0
          %919 = vmatpush1.bf16.msra.mxu0 %v898
          %920 = vmatprep.subr.bf16.mxu0 0
          %921 = vmatpush1.bf16.msra.mxu0 %v899
          %922 = vmatprep.subr.bf16.mxu0 0
          %923 = vmatpush1.bf16.msra.mxu0 %v900
          %924 = vmatprep.subr.bf16.mxu0 0
          %925 = vmatpush1.bf16.msra.mxu0 %v901
          %926 = vmatprep.subr.bf16.mxu0 0
          %927 = vmatpush1.bf16.msra.mxu0 0
          %928 = vmatprep.subr.bf16.mxu0 0
          %929 = vmatpush1.bf16.msra.mxu0 0
          %930 = vmatprep.subr.bf16.mxu0 0
          %931 = vmatpush1.bf16.msra.mxu0 0
          %932 = vmatprep.subr.bf16.mxu0 0
          %933 = vmatpush1.bf16.msra.mxu0 0
          %934 = vmatprep.subr.bf16.mxu0 0
          %935 = vmatpush1.bf16.msra.mxu0 0
          %936 = vmatprep.subr.bf16.mxu0 0
          %937 = vmatpush1.bf16.msra.mxu0 0
          %938 = vmatprep.subr.bf16.mxu0 0
          %939 = vmatpush1.bf16.msra.mxu0 0
          %940 = vmatprep.subr.bf16.mxu0 0
          %941 = vmatpush1.bf16.msra.mxu0 0
          %942 = vmatprep.mubr.bf16.mxu0 0
          %943 = vmatmul.mubr.bf16.gmra.mrb[0].mxu0 %v838
          %v944 = vpop.f32.mrb[0].mxu0
          %v945 = vadd.f32 0.0, %v944
          %v946 = vpop.f32.mrb[0].mxu0
          %v947 = vpop.f32.mrb[0].mxu0
          %v948 = vadd.f32 0.0, %v947
          %v949 = vpop.f32.mrb[0].mxu0
          %950 = vmatprep.mubr.bf16.mxu0 0
          %951 = vmatmul.mubr.bf16.gmra.mrb[0].mxu0 %v839
          %v952 = vpop.f32.mrb[0].mxu0
          %v953 = vadd.f32 0.0, %v952
          %v954 = vpop.f32.mrb[0].mxu0
          %v955 = vpop.f32.mrb[0].mxu0
          %v956 = vadd.f32 0.0, %v955
          %v957 = vpop.f32.mrb[0].mxu0
          %958 = vmatprep.mubr.bf16.mxu0 0
          %959 = vmatmul.mubr.bf16.gmra.mrb[0].mxu0 %v840
          %v960 = vpop.f32.mrb[0].mxu0
          %v961 = vadd.f32 0.0, %v960
          %v962 = vpop.f32.mrb[0].mxu0
          %v963 = vpop.f32.mrb[0].mxu0
          %v964 = vadd.f32 0.0, %v963
          %v965 = vpop.f32.mrb[0].mxu0
          %966 = vmatprep.mubr.bf16.mxu0 0
          %967 = vmatmul.mubr.bf16.gmra.mrb[0].mxu0 %v841
          %v968 = vpop.f32.mrb[0].mxu0
          %v969 = vadd.f32 0.0, %v968
          %v970 = vpop.f32.mrb[0].mxu0
          %v971 = vpop.f32.mrb[0].mxu0
          %v972 = vadd.f32 0.0, %v971
          %v973 = vpop.f32.mrb[0].mxu0
          %974 = vmatprep.mubr.bf16.mxu0 0
          %975 = vmatmul.mubr.bf16.gmra.mrb[0].mxu0 %v842
          %v976 = vpop.f32.mrb[0].mxu0
          %v977 = vadd.f32 0.0, %v976
          %v978 = vpop.f32.mrb[0].mxu0
          %v979 = vpop.f32.mrb[0].mxu0
          %v980 = vadd.f32 0.0, %v979
          %v981 = vpop.f32.mrb[0].mxu0
          %982 = vmatprep.mubr.bf16.mxu0 0
          %983 = vmatmul.mubr.bf16.gmra.mrb[0].mxu0 %v843
          %v984 = vpop.f32.mrb[0].mxu0
          %v985 = vadd.f32 0.0, %v984
          %v986 = vpop.f32.mrb[0].mxu0
          %v987 = vpop.f32.mrb[0].mxu0
          %v988 = vadd.f32 0.0, %v987
          %v989 = vpop.f32.mrb[0].mxu0
          %990 = vmatprep.mubr.bf16.mxu0 0
          %991 = vmatmul.mubr.bf16.gmra.mrb[0].mxu0 %v844
          %v992 = vpop.f32.mrb[0].mxu0
          %v993 = vadd.f32 0.0, %v992
          %v994 = vpop.f32.mrb[0].mxu0
          %v995 = vpop.f32.mrb[0].mxu0
          %v996 = vadd.f32 0.0, %v995
          %v997 = vpop.f32.mrb[0].mxu0
          %998 = vmatprep.mubr.bf16.mxu0 0
          %999 = vmatmul.mubr.bf16.gmra.mrb[0].mxu0 %v845
          %v1000 = vpop.f32.mrb[0].mxu0
          %v1001 = vadd.f32 0.0, %v1000
          %v1002 = vpop.f32.mrb[0].mxu0
          %v1003 = vpop.f32.mrb[0].mxu0
          %v1004 = vadd.f32 0.0, %v1003
          %v1005 = vpop.f32.mrb[0].mxu0
          %1006 = vdwg.mxu0
          %v1007 = vstv %s723
          %v1008 = vmul.f32 %v1007, %v945
          %v1009 = vmul.f32 %v1007, %v948
          %v1010 = vmul.f32 %v1007, %v953
          %v1011 = vmul.f32 %v1007, %v956
          %v1012 = vmul.f32 %v1007, %v961
          %v1013 = vmul.f32 %v1007, %v964
          %v1014 = vmul.f32 %v1007, %v969
          %v1015 = vmul.f32 %v1007, %v972
          %v1016 = vmul.f32 %v1007, %v977
          %v1017 = vmul.f32 %v1007, %v980
          %v1018 = vmul.f32 %v1007, %v985
          %v1019 = vmul.f32 %v1007, %v988
          %v1020 = vmul.f32 %v1007, %v993
          %v1021 = vmul.f32 %v1007, %v996
          %v1022 = vmul.f32 %v1007, %v1001
          %v1023 = vmul.f32 %v1007, %v1004
          %v1024 = vadd.f32 %v822, %v1008
          %v1025 = vadd.f32 %v823, %v1009
          %v1026 = vadd.f32 %v824, %v1010
          %v1027 = vadd.f32 %v825, %v1011
          %v1028 = vadd.f32 %v826, %v1012
          %v1029 = vadd.f32 %v827, %v1013
          %v1030 = vadd.f32 %v828, %v1014
          %v1031 = vadd.f32 %v829, %v1015
          %v1032 = vadd.f32 %v830, %v1016
          %v1033 = vadd.f32 %v831, %v1017
          %v1034 = vadd.f32 %v832, %v1018
          %v1035 = vadd.f32 %v833, %v1019
          %v1036 = vadd.f32 %v834, %v1020
          %v1037 = vadd.f32 %v835, %v1021
          %v1038 = vadd.f32 %v836, %v1022
          %v1039 = vadd.f32 %v837, %v1023
          %v1040 = vadd.f32 %v1024, %v1025
          %v1041 = vadd.f32 %v1040, %v1026
          %v1042 = vadd.f32 %v1041, %v1027
          %v1043 = vadd.f32 %v1042, %v1028
          %v1044 = vadd.f32 %v1043, %v1029
          %v1045 = vadd.f32 %v1044, %v1030
          %v1046 = vadd.f32 %v1045, %v1031
          %v1047 = vadd.f32 %v1046, %v1032
          %v1048 = vadd.f32 %v1047, %v1033
          %v1049 = vadd.f32 %v1048, %v1034
          %v1050 = vadd.f32 %v1049, %v1035
          %v1051 = vadd.f32 %v1050, %v1036
          %v1052 = vadd.f32 %v1051, %v1037
          %v1053 = vadd.f32 %v1052, %v1038
          %v1054 = vadd.f32 %v1053, %v1039
          %v1055 = vrot.slane %v1054, 4
          %v1056 = vadd.f32 %v1054, %v1055
          %v1057 = vrot.slane %v1056, 2
          %v1058 = vadd.f32 %v1056, %v1057
          %v1059 = vrot.slane %v1058, 1
          %v1060 = vadd.f32 %v1058, %v1059
          %v1061 = vmul.f32 %v1060, 0.015625
          %v1062 = vmul.f32 %v1024, %v1024
          %v1063 = vmul.f32 %v1025, %v1025
          %v1064 = vmul.f32 %v1026, %v1026
          %v1065 = vmul.f32 %v1027, %v1027
          %v1066 = vmul.f32 %v1028, %v1028
          %v1067 = vmul.f32 %v1029, %v1029
          %v1068 = vmul.f32 %v1030, %v1030
          %v1069 = vmul.f32 %v1031, %v1031
          %v1070 = vmul.f32 %v1032, %v1032
          %v1071 = vmul.f32 %v1033, %v1033
          %v1072 = vmul.f32 %v1034, %v1034
          %v1073 = vmul.f32 %v1035, %v1035
          %v1074 = vmul.f32 %v1036, %v1036
          %v1075 = vmul.f32 %v1037, %v1037
          %v1076 = vmul.f32 %v1038, %v1038
          %v1077 = vmul.f32 %v1039, %v1039
          %v1078 = vadd.f32 %v1062, %v1063
          %v1079 = vadd.f32 %v1078, %v1064
          %v1080 = vadd.f32 %v1079, %v1065
          %v1081 = vadd.f32 %v1080, %v1066
          %v1082 = vadd.f32 %v1081, %v1067
          %v1083 = vadd.f32 %v1082, %v1068
          %v1084 = vadd.f32 %v1083, %v1069
          %v1085 = vadd.f32 %v1084, %v1070
          %v1086 = vadd.f32 %v1085, %v1071
          %v1087 = vadd.f32 %v1086, %v1072
          %v1088 = vadd.f32 %v1087, %v1073
          %v1089 = vadd.f32 %v1088, %v1074
          %v1090 = vadd.f32 %v1089, %v1075
          %v1091 = vadd.f32 %v1090, %v1076
          %v1092 = vadd.f32 %v1091, %v1077
          %v1093 = vrot.slane %v1092, 4
          %v1094 = vadd.f32 %v1092, %v1093
          %v1095 = vrot.slane %v1094, 2
          %v1096 = vadd.f32 %v1094, %v1095
          %v1097 = vrot.slane %v1096, 1
          %v1098 = vadd.f32 %v1096, %v1097
          %v1099 = vmul.f32 %v1098, 0.015625
          %v1100 = vmul.f32 %v1061, %v1061
          %v1101 = vsub.f32 %v1099, %v1100
          %v1102 = vsub.f32 %v1024, %v1061
          %v1103 = vsub.f32 %v1025, %v1061
          %v1104 = vsub.f32 %v1026, %v1061
          %v1105 = vsub.f32 %v1027, %v1061
          %v1106 = vsub.f32 %v1028, %v1061
          %v1107 = vsub.f32 %v1029, %v1061
          %v1108 = vsub.f32 %v1030, %v1061
          %v1109 = vsub.f32 %v1031, %v1061
          %v1110 = vsub.f32 %v1032, %v1061
          %v1111 = vsub.f32 %v1033, %v1061
          %v1112 = vsub.f32 %v1034, %v1061
          %v1113 = vsub.f32 %v1035, %v1061
          %v1114 = vsub.f32 %v1036, %v1061
          %v1115 = vsub.f32 %v1037, %v1061
          %v1116 = vsub.f32 %v1038, %v1061
          %v1117 = vsub.f32 %v1039, %v1061
          %v1118 = vadd.f32 %v1101, 1e-05
          %v1119 = vrsqrt.pop %v1118
          %v1120 = vmul.f32 %v1102, %v1119
          %v1121 = vmul.f32 %v1103, %v1119
          %v1122 = vmul.f32 %v1104, %v1119
          %v1123 = vmul.f32 %v1105, %v1119
          %v1124 = vmul.f32 %v1106, %v1119
          %v1125 = vmul.f32 %v1107, %v1119
          %v1126 = vmul.f32 %v1108, %v1119
          %v1127 = vmul.f32 %v1109, %v1119
          %v1128 = vmul.f32 %v1110, %v1119
          %v1129 = vmul.f32 %v1111, %v1119
          %v1130 = vmul.f32 %v1112, %v1119
          %v1131 = vmul.f32 %v1113, %v1119
          %v1132 = vmul.f32 %v1114, %v1119
          %v1133 = vmul.f32 %v1115, %v1119
          %v1134 = vmul.f32 %v1116, %v1119
          %v1135 = vmul.f32 %v1117, %v1119
          %v1136 = vld [vmem:[%s396] sm:$0x1]
          %v1138 = vlaneseq
          %v1139 = vshrl.u32 %v1138, 7
          %v1140 = vsub.s32 0, %v1139
          %v1141 = vrot.slane %v1136, %v1140
          %v1143 = vmul.f32 %v1120, %v1141
          %v1144 = vmul.f32 %v1121, %v1141
          %v1145 = vmul.f32 %v1122, %v1141
          %v1146 = vmul.f32 %v1123, %v1141
          %v1147 = vmul.f32 %v1124, %v1141
          %v1148 = vmul.f32 %v1125, %v1141
          %v1149 = vmul.f32 %v1126, %v1141
          %v1150 = vmul.f32 %v1127, %v1141
          %v1151 = vmul.f32 %v1128, %v1141
          %v1152 = vmul.f32 %v1129, %v1141
          %v1153 = vmul.f32 %v1130, %v1141
          %v1154 = vmul.f32 %v1131, %v1141
          %v1155 = vmul.f32 %v1132, %v1141
          %v1156 = vmul.f32 %v1133, %v1141
          %v1157 = vmul.f32 %v1134, %v1141
          %v1158 = vmul.f32 %v1135, %v1141
          %v1159 = vld [vmem:[%s399] sm:$0x1]
          %v1161 = vlaneseq
          %v1162 = vshrl.u32 %v1161, 7
          %v1163 = vsub.s32 0, %v1162
          %v1164 = vrot.slane %v1159, %v1163
          %v1166 = vadd.f32 %v1143, %v1164
          %v1167 = vadd.f32 %v1144, %v1164
          %v1168 = vadd.f32 %v1145, %v1164
          %v1169 = vadd.f32 %v1146, %v1164
          %v1170 = vadd.f32 %v1147, %v1164
          %v1171 = vadd.f32 %v1148, %v1164
          %v1172 = vadd.f32 %v1149, %v1164
          %v1173 = vadd.f32 %v1150, %v1164
          %v1174 = vadd.f32 %v1151, %v1164
          %v1175 = vadd.f32 %v1152, %v1164
          %v1176 = vadd.f32 %v1153, %v1164
          %v1177 = vadd.f32 %v1154, %v1164
          %v1178 = vadd.f32 %v1155, %v1164
          %v1179 = vadd.f32 %v1156, %v1164
          %v1180 = vadd.f32 %v1157, %v1164
          %v1181 = vadd.f32 %v1158, %v1164
          %v1182 = vmax.f32 %v1166, 0.0
          %v1183 = vmax.f32 %v1167, 0.0
          %v1184 = vmax.f32 %v1168, 0.0
          %v1185 = vmax.f32 %v1169, 0.0
          %v1186 = vmax.f32 %v1170, 0.0
          %v1187 = vmax.f32 %v1171, 0.0
          %v1188 = vmax.f32 %v1172, 0.0
          %v1189 = vmax.f32 %v1173, 0.0
          %v1190 = vmax.f32 %v1174, 0.0
          %v1191 = vmax.f32 %v1175, 0.0
          %v1192 = vmax.f32 %v1176, 0.0
          %v1193 = vmax.f32 %v1177, 0.0
          %v1194 = vmax.f32 %v1178, 0.0
          %v1195 = vmax.f32 %v1179, 0.0
          %v1196 = vmax.f32 %v1180, 0.0
          %v1197 = vmax.f32 %v1181, 0.0
          %v1198 = vpack.c.bf16 %v1183, %v1182
          %v1199 = vpack.c.bf16 %v1185, %v1184
          %v1200 = vpack.c.bf16 %v1187, %v1186
          %v1201 = vpack.c.bf16 %v1189, %v1188
          %v1202 = vpack.c.bf16 %v1191, %v1190
          %v1203 = vpack.c.bf16 %v1193, %v1192
          %v1204 = vpack.c.bf16 %v1195, %v1194
          %v1205 = vpack.c.bf16 %v1197, %v1196
          %1206 = vst [vmem:[#allocation2] sm:$0xff] %v1198
          %1207 = vst [vmem:[#allocation2 + $0x8] sm:$0xff] %v1199
          %1208 = vst [vmem:[#allocation2 + $0x10] sm:$0xff] %v1200
          %1209 = vst [vmem:[#allocation2 + $0x18] sm:$0xff] %v1201
          %1210 = vst [vmem:[#allocation2 + $0x20] sm:$0xff] %v1202
          %1211 = vst [vmem:[#allocation2 + $0x28] sm:$0xff] %v1203
          %1212 = vst [vmem:[#allocation2 + $0x30] sm:$0xff] %v1204
          %1213 = vst [vmem:[#allocation2 + $0x38] sm:$0xff] %v1205
        $region76: #{tpu_custom_call.1} parent=47 // pred_fallthru
          _
        %p1214 = scmp.eq.s32.totalorder %s33, 2
        %p1215 = pnand %p1214, %p402
        %p1216 = pneg %p1215
        // Predicated region
        $region77: #{tpu_custom_call.1} parent=47 // pred_check
          _
        $region78: #{tpu_custom_call.1} parent=47 // pred_check_branch
          %1218 = sbr.rel (%p1215) target = $region80
        $region79: #{tpu_custom_call.1} parent=47 // pred_region
          %v1219 = vld [vmem:[#allocation2] sm:$0xff]
          %v1220 = vld [vmem:[#allocation2 + $0x8] sm:$0xff]
          %v1221 = vld [vmem:[#allocation2 + $0x10] sm:$0xff]
          %v1222 = vld [vmem:[#allocation2 + $0x18] sm:$0xff]
          %v1223 = vld [vmem:[#allocation2 + $0x20] sm:$0xff]
          %v1224 = vld [vmem:[#allocation2 + $0x28] sm:$0xff]
          %v1225 = vld [vmem:[#allocation2 + $0x30] sm:$0xff]
          %v1226 = vld [vmem:[#allocation2 + $0x38] sm:$0xff]
          %v1227 = vld [vmem:[#allocation12] sm:$0xf]
          %v1228 = vld [vmem:[#allocation12 + $0x4] sm:$0xf]
          %v1229 = vld [vmem:[#allocation12 + $0x8] sm:$0xf]
          %v1230 = vld [vmem:[#allocation12 + $0xc] sm:$0xf]
          %v1231 = vld [vmem:[#allocation12 + $0x10] sm:$0xf]
          %v1232 = vld [vmem:[#allocation12 + $0x14] sm:$0xf]
          %v1233 = vld [vmem:[#allocation12 + $0x18] sm:$0xf]
          %v1234 = vld [vmem:[#allocation12 + $0x1c] sm:$0xf]
          %v1235 = vld [vmem:[#allocation12 + $0x20] sm:$0xf]
          %v1236 = vld [vmem:[#allocation12 + $0x24] sm:$0xf]
          %v1237 = vld [vmem:[#allocation12 + $0x28] sm:$0xf]
          %v1238 = vld [vmem:[#allocation12 + $0x2c] sm:$0xf]
          %v1239 = vld [vmem:[#allocation12 + $0x30] sm:$0xf]
          %v1240 = vld [vmem:[#allocation12 + $0x34] sm:$0xf]
          %v1241 = vld [vmem:[#allocation12 + $0x38] sm:$0xf]
          %v1242 = vld [vmem:[#allocation12 + $0x3c] sm:$0xf]
          %v1243 = vld [vmem:[%s7] sm:$0x1]
          %v1245 = vlaneseq
          %v1246 = vshrl.u32 %v1245, 7
          %v1247 = vsub.s32 0, %v1246
          %v1248 = vrot.slane %v1243, %v1247
          %v1266 = vunpack.c.l.b16 %v1227
          %v1267 = vunpack.c.l.b16 %v1228
          %v1268 = vunpack.c.l.b16 %v1229
          %v1269 = vunpack.c.l.b16 %v1230
          %v1270 = vunpack.c.l.b16 %v1231
          %v1271 = vunpack.c.l.b16 %v1232
          %v1272 = vunpack.c.l.b16 %v1233
          %v1273 = vunpack.c.l.b16 %v1234
          %v1274 = vunpack.c.l.b16 %v1235
          %v1275 = vunpack.c.l.b16 %v1236
          %v1276 = vunpack.c.l.b16 %v1237
          %v1277 = vunpack.c.l.b16 %v1238
          %v1278 = vunpack.c.l.b16 %v1239
          %v1279 = vunpack.c.l.b16 %v1240
          %v1280 = vunpack.c.l.b16 %v1241
          %v1281 = vunpack.c.l.b16 %v1242
          %v1282 = vpack.c.b16 %v1267, %v1266
          %v1283 = vpack.c.b16 %v1269, %v1268
          %v1284 = vpack.c.b16 %v1271, %v1270
          %v1285 = vpack.c.b16 %v1273, %v1272
          %v1286 = vpack.c.b16 %v1275, %v1274
          %v1287 = vpack.c.b16 %v1277, %v1276
          %v1288 = vpack.c.b16 %v1279, %v1278
          %v1289 = vpack.c.b16 %v1281, %v1280
          %1298 = vmatprep.subr.bf16.mxu0 0
          %1299 = vmatpush1.bf16.msra.mxu0 %v1282
          %1300 = vmatprep.subr.bf16.mxu0 0
          %1301 = vmatpush1.bf16.msra.mxu0 %v1283
          %1302 = vmatprep.subr.bf16.mxu0 0
          %1303 = vmatpush1.bf16.msra.mxu0 %v1284
          %1304 = vmatprep.subr.bf16.mxu0 0
          %1305 = vmatpush1.bf16.msra.mxu0 %v1285
          %1306 = vmatprep.subr.bf16.mxu0 0
          %1307 = vmatpush1.bf16.msra.mxu0 %v1286
          %1308 = vmatprep.subr.bf16.mxu0 0
          %1309 = vmatpush1.bf16.msra.mxu0 %v1287
          %1310 = vmatprep.subr.bf16.mxu0 0
          %1311 = vmatpush1.bf16.msra.mxu0 %v1288
          %1312 = vmatprep.subr.bf16.mxu0 0
          %1313 = vmatpush1.bf16.msra.mxu0 %v1289
          %1314 = vmatprep.subr.bf16.mxu0 0
          %1315 = vmatpush1.bf16.msra.mxu0 0
          %1316 = vmatprep.subr.bf16.mxu0 0
          %1317 = vmatpush1.bf16.msra.mxu0 0
          %1318 = vmatprep.subr.bf16.mxu0 0
          %1319 = vmatpush1.bf16.msra.mxu0 0
          %1320 = vmatprep.subr.bf16.mxu0 0
          %1321 = vmatpush1.bf16.msra.mxu0 0
          %1322 = vmatprep.subr.bf16.mxu0 0
          %1323 = vmatpush1.bf16.msra.mxu0 0
          %1324 = vmatprep.subr.bf16.mxu0 0
          %1325 = vmatpush1.bf16.msra.mxu0 0
          %1326 = vmatprep.subr.bf16.mxu0 0
          %1327 = vmatpush1.bf16.msra.mxu0 0
          %1328 = vmatprep.subr.bf16.mxu0 0
          %1329 = vmatpush1.bf16.msra.mxu0 0
          %1330 = vmatprep.mubr.bf16.mxu0 0
          %1331 = vmatmul.mubr.bf16.gmra.mrb[0].mxu0 %v1219
          %v1332 = vpop.f32.mrb[0].mxu0
          %v1333 = vadd.f32 %v1248, %v1332
          %v1334 = vpop.f32.mrb[0].mxu0
          %v1335 = vpop.f32.mrb[0].mxu0
          %v1336 = vadd.f32 %v1248, %v1335
          %v1337 = vpop.f32.mrb[0].mxu0
          %1338 = vmatprep.mubr.bf16.mxu0 0
          %1339 = vmatmul.mubr.bf16.gmra.mrb[0].mxu0 %v1220
          %v1340 = vpop.f32.mrb[0].mxu0
          %v1341 = vadd.f32 %v1248, %v1340
          %v1342 = vpop.f32.mrb[0].mxu0
          %v1343 = vpop.f32.mrb[0].mxu0
          %v1344 = vadd.f32 %v1248, %v1343
          %v1345 = vpop.f32.mrb[0].mxu0
          %1346 = vmatprep.mubr.bf16.mxu0 0
          %1347 = vmatmul.mubr.bf16.gmra.mrb[0].mxu0 %v1221
          %v1348 = vpop.f32.mrb[0].mxu0
          %v1349 = vadd.f32 %v1248, %v1348
          %v1350 = vpop.f32.mrb[0].mxu0
          %v1351 = vpop.f32.mrb[0].mxu0
          %v1352 = vadd.f32 %v1248, %v1351
          %v1353 = vpop.f32.mrb[0].mxu0
          %1354 = vmatprep.mubr.bf16.mxu0 0
          %1355 = vmatmul.mubr.bf16.gmra.mrb[0].mxu0 %v1222
          %v1356 = vpop.f32.mrb[0].mxu0
          %v1357 = vadd.f32 %v1248, %v1356
          %v1358 = vpop.f32.mrb[0].mxu0
          %v1359 = vpop.f32.mrb[0].mxu0
          %v1360 = vadd.f32 %v1248, %v1359
          %v1361 = vpop.f32.mrb[0].mxu0
          %1362 = vmatprep.mubr.bf16.mxu0 0
          %1363 = vmatmul.mubr.bf16.gmra.mrb[0].mxu0 %v1223
          %v1364 = vpop.f32.mrb[0].mxu0
          %v1365 = vadd.f32 %v1248, %v1364
          %v1366 = vpop.f32.mrb[0].mxu0
          %v1367 = vpop.f32.mrb[0].mxu0
          %v1368 = vadd.f32 %v1248, %v1367
          %v1369 = vpop.f32.mrb[0].mxu0
          %1370 = vmatprep.mubr.bf16.mxu0 0
          %1371 = vmatmul.mubr.bf16.gmra.mrb[0].mxu0 %v1224
          %v1372 = vpop.f32.mrb[0].mxu0
          %v1373 = vadd.f32 %v1248, %v1372
          %v1374 = vpop.f32.mrb[0].mxu0
          %v1375 = vpop.f32.mrb[0].mxu0
          %v1376 = vadd.f32 %v1248, %v1375
          %v1377 = vpop.f32.mrb[0].mxu0
          %1378 = vmatprep.mubr.bf16.mxu0 0
          %1379 = vmatmul.mubr.bf16.gmra.mrb[0].mxu0 %v1225
          %v1380 = vpop.f32.mrb[0].mxu0
          %v1381 = vadd.f32 %v1248, %v1380
          %v1382 = vpop.f32.mrb[0].mxu0
          %v1383 = vpop.f32.mrb[0].mxu0
          %v1384 = vadd.f32 %v1248, %v1383
          %v1385 = vpop.f32.mrb[0].mxu0
          %1386 = vmatprep.mubr.bf16.mxu0 0
          %1387 = vmatmul.mubr.bf16.gmra.mrb[0].mxu0 %v1226
          %v1388 = vpop.f32.mrb[0].mxu0
          %v1389 = vadd.f32 %v1248, %v1388
          %v1390 = vpop.f32.mrb[0].mxu0
          %v1391 = vpop.f32.mrb[0].mxu0
          %v1392 = vadd.f32 %v1248, %v1391
          %v1393 = vpop.f32.mrb[0].mxu0
          %1394 = vdwg.mxu0
          %1395 = vst [vmem:[#allocation14] sm:$0xff] %v1333
          %1396 = vst [vmem:[#allocation14 + $0x8] sm:$0xff] %v1336
          %1397 = vst [vmem:[#allocation14 + $0x10] sm:$0xff] %v1341
          %1398 = vst [vmem:[#allocation14 + $0x18] sm:$0xff] %v1344
          %1399 = vst [vmem:[#allocation14 + $0x20] sm:$0xff] %v1349
          %1400 = vst [vmem:[#allocation14 + $0x28] sm:$0xff] %v1352
          %1401 = vst [vmem:[#allocation14 + $0x30] sm:$0xff] %v1357
          %1402 = vst [vmem:[#allocation14 + $0x38] sm:$0xff] %v1360
          %1403 = vst [vmem:[#allocation14 + $0x40] sm:$0xff] %v1365
          %1404 = vst [vmem:[#allocation14 + $0x48] sm:$0xff] %v1368
          %1405 = vst [vmem:[#allocation14 + $0x50] sm:$0xff] %v1373
          %1406 = vst [vmem:[#allocation14 + $0x58] sm:$0xff] %v1376
          %1407 = vst [vmem:[#allocation14 + $0x60] sm:$0xff] %v1381
          %1408 = vst [vmem:[#allocation14 + $0x68] sm:$0xff] %v1384
          %1409 = vst [vmem:[#allocation14 + $0x70] sm:$0xff] %v1389
          %1410 = vst [vmem:[#allocation14 + $0x78] sm:$0xff] %v1392
        $region80: #{tpu_custom_call.1} parent=47 // pred_fallthru
          _
        // Predicated region
        $region81: #{tpu_custom_call.1} parent=47 // pred_check
          %p1411 = pneg %p223
        $region82: #{tpu_custom_call.1} parent=47 // pred_check_branch
          %1413 = sbr.rel (%p1411) target = $region84
        $region83: #{tpu_custom_call.1} parent=47 // pred_region
          %s1415 = ssub.s32 2048, 2048
          %1416 = vsyncadd [#allocation8], %s1415
          %s1417 = sshll.u32 [#allocation14], 4
          %s1418 = int_to_ptr.vmem [resolvable:$true] %s1417
          %1423 = dma.vmem_to_hbm [thread:$0]  %s1418, 2048, %s8, [#allocation8], 128, 128, 8
        $region84: #{tpu_custom_call.1} parent=47 // pred_fallthru
          _
        // Predicated region
        $region85: #{tpu_custom_call.1} parent=47 // pred_check
          %p1424 = pneg %p223
        $region86: #{tpu_custom_call.1} parent=47 // pred_check_branch
          %1426 = sbr.rel (%p1424) target = $region88
        $region87: #{tpu_custom_call.1} parent=47 // pred_region
          %1427 = dma.done [#allocation8], 2048
        $region88: #{tpu_custom_call.1} parent=47 // pred_fallthru
          _
      $region48: #{tpu_custom_call.1} parent=5 // pred_fallthru
        _
      %p1428 = scmp.le.s32.totalorder 2, %s24
      // Predicated region
      $region89: #{tpu_custom_call.1} parent=5 // pred_check
        %p1429 = pneg %p1428
      $region90: #{tpu_custom_call.1} parent=5 // pred_check_branch
        %1431 = sbr.rel (%p1429) target = $region92
      $region91: #{tpu_custom_call.1} parent=5 // pred_region
        %s1432 = ssub.s32 %s24, 2
      $region92: #{tpu_custom_call.1} parent=5 // pred_fallthru
        _
    $region6: #{tpu_custom_call.1} parent=1 // loop_footer
      %s28 = sadd.s32 1, %s24
    $region7: #{tpu_custom_call.1} parent=1 // loop_footer_branch
      %23 = sbr.rel target = $region3
    $region8: #{tpu_custom_call.1} parent=1 // loop_exit
      _
    %1433 = vsyncpa [#allocation7], 1
    %s1434 = scalar_lea.sflag [#allocation7], 1
    %1435 = vsyncpa %s1434, 1
    %1436 = vsyncpa [#allocation10], 1
    %s1437 = scalar_lea.sflag [#allocation10], 1
    %1438 = vsyncpa %s1437, 1
    %1439 = vsyncpa [#allocation13], 1
    %1440 = vsyncpa [#allocation8], 1
    %s1441 = scalar_lea.sflag [#allocation8], 1
    %1442 = vsyncpa %s1441, 1

</llo_original>
